<compile_context>
chip_gen: v5e
topology: v5e:2x2
jax: 0.10.0
libtpu: 0.0.40
codegen_flags: <defaults>
</compile_context>

<pallas_src>
import functools

import numpy as np
import jax
import jax.numpy as jnp
from jax.experimental import pallas as pl
from jax.experimental.pallas import tpu as pltpu


def _round_up(x: int, m: int) -> int:
    return (x + m - 1) // m * m


def _gaussian_1d(sigma: float, width: int):
    """1-D normalized Gaussian weights.

    The 2-D kernel built by GaussianKernel factorizes exactly as
    K = outer(g, g) with sum(g) == 1, so the depthwise conv2d equals a row
    pass followed by a column pass with g (same zero padding).
    """
    assert not ((width is None or width == 0) and (sigma is None or sigma == 0.0)), \
        "both sigma and width are invalid"
    if width is None or width == 0:
        width = int(2.0 * 3.0 * sigma + 1.0)
    if width % 2 == 0:
        width += 1
    if sigma is None or sigma == 0.0:
        sigma = (width - 1) / 6.0
    half = width // 2
    lin = np.linspace(-half, half, width)
    e = np.exp(-(lin ** 2) / (2.0 * sigma ** 2))
    g = e / np.sum(e)
    return tuple(float(v) for v in g), width


def _dog_kernel(x_ref, o_ref, *, g1, g2, P, Ho, Wo):
    """out = blur(x, g1) - blur(x, g2) for one block of images.

    x_ref: (TB, Ho + 2P, Wo + 2P) input block, zero halo already in HBM.
    o_ref: (TB, Ho, Wo) lane/sublane-dense output block.
    """
    p1 = len(g1) // 2
    p2 = len(g2) // 2
    f32 = jnp.float32

    def lane(d):
        # Lane-shifted slice of the padded input (static offsets).
        c0 = P + d
        return x_ref[:, :, c0:c0 + Wo].astype(f32)

    def wgt(g, p, d):
        # Symmetric pair weight (exact for Gaussians: g[p-d] == g[p+d]).
        return f32(g[p]) if d == 0 else f32(0.5 * (g[p - d] + g[p + d]))

    # ---- Row (lane) pass: one shared sweep over the 2P+1 shifted slices,
    # accumulating both Gaussians; symmetric taps paired (1 add, 1 mul). ----
    center = lane(0)
    r1 = wgt(g1, p1, 0) * center
    r2 = wgt(g2, p2, 0) * center
    for d in range(1, P + 1):
        pair = lane(-d) + lane(d)          # shared between g1 and g2
        if d <= p2:
            r2 = r2 + wgt(g2, p2, d) * pair
        if d <= p1:
            r1 = r1 + wgt(g1, p1, d) * pair

    # ---- Column (sublane) pass with the DoG subtraction folded in
    # (+g1 on r1, -g2 on r2), single accumulator, single store. ----
    def rows(r, d):
        return r[:, P + d:P + d + Ho, :]

    out = wgt(g1, p1, 0) * rows(r1, 0) - wgt(g2, p2, 0) * rows(r2, 0)
    for d in range(1, P + 1):
        if d <= p1:
            out = out + wgt(g1, p1, d) * (rows(r1, -d) + rows(r1, d))
        if d <= p2:
            out = out - wgt(g2, p2, d) * (rows(r2, -d) + rows(r2, d))

    o_ref[...] = out.astype(o_ref.dtype)


class DoG:
    """JAX/Pallas port of the PyTorch DoG module."""

    def __init__(self, sigma1: float = 0.0, sigma2: float = 0.0,
                 width1: int = 5, width2: int = 9):
        self.g1, self.w1 = _gaussian_1d(sigma1, width1)
        self.g2, self.w2 = _gaussian_1d(sigma2, width2)
        self.P = max(self.w1, self.w2) // 2

    def __call__(self, x, block_images: int = 8):
        B, C, H, W = x.shape
        N = B * C
        P = self.P

        # Lane/sublane-dense tiles: output H -> multiple of 8 (sublanes),
        # output W -> multiple of 128 (lanes); input adds the 2P conv halo.
        Ho = _round_up(H, 8)
        Wo = _round_up(W, 128)
        Hi = Ho + 2 * P
        Wi = Wo + 2 * P

        # Generation-aware VMEM budget.
        try:
            phys_vmem = int(pltpu.get_tpu_info().vmem_capacity_bytes)
        except Exception:
            phys_vmem = 64 << 20                 # conservative (v7x per-TC)
        if phys_vmem >= (128 << 20):
            vmem_cap = 100 << 20                 # v5e / v6e: use the 128 MiB
        else:
            vmem_cap = 48 << 20                  # v7x: headroom out of 64 MiB

        itemsize = jnp.dtype(x.dtype).itemsize

        def vmem_estimate(tb):
            in_blk = 2 * tb * Hi * Wi * itemsize   # double-buffered input
            out_blk = 2 * tb * Ho * Wo * itemsize  # double-buffered output
            interm = 2 * tb * Hi * Wo * 4          # r1 / r2 f32 intermediates
            acc = tb * Ho * Wo * 4                 # folded output accumulator
            return in_blk + out_blk + interm + acc + (2 << 20)

        TB = max(1, min(N, block_images))
        while TB > 1 and vmem_estimate(TB) > vmem_cap:
            TB -= 1
        # Megacore (v7x): keep the (single, parallel) grid axis >= 2 steps.
        if N > 1 and (N + TB - 1) // TB < 2:
            TB = (N + 1) // 2

        nb = (N + TB - 1) // TB
        Np = nb * TB

        # One HBM pad covers: batch round-up, the zero conv-halo (matching
        # F.conv2d(padding=P)) and the lane/sublane alignment padding.  The
        # alignment extras are zero and sliced off afterwards, so outputs in
        # [0,H) x [0,W) are bit-exact wrt the zero-padded convolution.
        xf = x.reshape(N, H, W)
        xf = jnp.pad(xf, ((0, Np - N), (P, Hi - H - P), (P, Wi - W - P)))

        kernel = functools.partial(_dog_kernel, g1=self.g1, g2=self.g2,
                                   P=P, Ho=Ho, Wo=Wo)
        vmem_limit = int(min(vmem_cap, max(vmem_estimate(TB), 8 << 20)))

        out = pl.pallas_call(
            kernel,
            out_shape=jax.ShapeDtypeStruct((Np, Ho, Wo), x.dtype),
            grid_spec=pltpu.PrefetchScalarGridSpec(
                num_scalar_prefetch=0,
                grid=(nb,),
                in_specs=[pl.BlockSpec((TB, Hi, Wi), lambda i: (i, 0, 0))],
                out_specs=pl.BlockSpec((TB, Ho, Wo), lambda i: (i, 0, 0)),
            ),
            compiler_params=pltpu.CompilerParams(
                dimension_semantics=("parallel",),
                vmem_limit_bytes=vmem_limit),
        )(xf)

        return out[:N, :H, :W].reshape(B, C, H, W)


# ----------------- numpy reference (mirrors the torch module) -----------------
def _gaussian_kernel_2d_ref(sigma, width):
    if width is None or width == 0:
        width = int(2.0 * 3.0 * sigma + 1.0)
    if width % 2 == 0:
        width += 1
    if sigma is None or sigma == 0.0:
        sigma = (width - 1) / 6.0
    half = width // 2
    xg, yg = np.meshgrid(np.linspace(-half, half, width),
                         np.linspace(-half, half, width), indexing='xy')
    w = np.exp(-(xg ** 2 + yg ** 2) / (2.0 * sigma ** 2))
    w /= np.sum(w)
    return w.astype(np.float32)


def _depthwise_blur_ref(x, k2d):
    w = k2d.shape[0]
    p = w // 2
    B, C, H, W = x.shape
    xp = np.pad(x, ((0, 0), (0, 0), (p, p), (p, p)))
    out = np.zeros_like(x)
    for a in range(w):
        for b in range(w):
            out += k2d[a, b] * xp[:, :, a:a + H, b:b + W]
    return out


if __name__ == "__main__":
    key = jax.random.PRNGKey(0)
    x = jax.random.normal(key, (2, 4, 16, 16), dtype=jnp.float32)

    mod = DoG(sigma1=0.0, sigma2=0.0, width1=5, width2=9)
    out = jax.block_until_ready(mod(x))

    xn = np.asarray(x, dtype=np.float32)
    k1 = _gaussian_kernel_2d_ref(0.0, 5)
    k2 = _gaussian_kernel_2d_ref(0.0, 9)
    ref = _depthwise_blur_ref(xn, k1) - _depthwise_blur_ref(xn, k2)

    np.testing.assert_allclose(np.asarray(out), ref, rtol=1e-4, atol=1e-4)
    print("KERNEL_OK")
</pallas_src>

<mosaic_0001>
module attributes {stable_mosaic.version = 11 : i64} {
  func.func @_dog_kernel(%arg0: i32, %arg1: memref<4x24x136xf32, #tpu.memory_space<vmem>>, %arg2: memref<4x16x128xf32, #tpu.memory_space<vmem>>) attributes {dimension_semantics = [#tpu.dimension_semantics<parallel>], iteration_bounds = array<i64: 2>, scalar_prefetch = 0 : i64, scratch_operands = 0 : i64, tpu.core_type = #tpu.core_type<tc>, window_params = [{transform_indices = @transform_0, window_bounds = array<i64: 4, 24, 136>}, {transform_indices = @transform_1, window_bounds = array<i64: 4, 16, 128>}]} {
    %c0 = arith.constant 0 : index
    %c0_0 = arith.constant 0 : index
    %c4 = arith.constant 4 : index
    %0 = vector.load %arg1[%c0, %c0_0, %c4] : memref<4x24x136xf32, #tpu.memory_space<vmem>>, vector<4x24x128xf32>
    %cst = arith.constant 0.598256826 : f32
    %1 = vector.broadcast %cst : f32 to vector<4x24x128xf32>
    %2 = arith.mulf %1, %0 : vector<4x24x128xf32>
    %cst_1 = arith.constant 0.299372405 : f32
    %3 = vector.broadcast %cst_1 : f32 to vector<4x24x128xf32>
    %4 = arith.mulf %3, %0 : vector<4x24x128xf32>
    %c0_2 = arith.constant 0 : index
    %c0_3 = arith.constant 0 : index
    %c3 = arith.constant 3 : index
    %5 = vector.load %arg1[%c0_2, %c0_3, %c3] : memref<4x24x136xf32, #tpu.memory_space<vmem>>, vector<4x24x128xf32>
    %c0_4 = arith.constant 0 : index
    %c0_5 = arith.constant 0 : index
    %c5 = arith.constant 5 : index
    %6 = vector.load %arg1[%c0_4, %c0_5, %c5] : memref<4x24x136xf32, #tpu.memory_space<vmem>>, vector<4x24x128xf32>
    %7 = arith.addf %5, %6 : vector<4x24x128xf32>
    %cst_6 = arith.constant 0.225978151 : f32
    %8 = vector.broadcast %cst_6 : f32 to vector<4x24x128xf32>
    %9 = arith.mulf %8, %7 : vector<4x24x128xf32>
    %10 = arith.addf %4, %9 : vector<4x24x128xf32>
    %cst_7 = arith.constant 0.19422555 : f32
    %11 = vector.broadcast %cst_7 : f32 to vector<4x24x128xf32>
    %12 = arith.mulf %11, %7 : vector<4x24x128xf32>
    %13 = arith.addf %2, %12 : vector<4x24x128xf32>
    %c0_8 = arith.constant 0 : index
    %c0_9 = arith.constant 0 : index
    %c2 = arith.constant 2 : index
    %14 = vector.load %arg1[%c0_8, %c0_9, %c2] : memref<4x24x136xf32, #tpu.memory_space<vmem>>, vector<4x24x128xf32>
    %c0_10 = arith.constant 0 : index
    %c0_11 = arith.constant 0 : index
    %c6 = arith.constant 6 : index
    %15 = vector.load %arg1[%c0_10, %c0_11, %c6] : memref<4x24x136xf32, #tpu.memory_space<vmem>>, vector<4x24x128xf32>
    %16 = arith.addf %14, %15 : vector<4x24x128xf32>
    %cst_12 = arith.constant 0.0971919894 : f32
    %17 = vector.broadcast %cst_12 : f32 to vector<4x24x128xf32>
    %18 = arith.mulf %17, %16 : vector<4x24x128xf32>
    %19 = arith.addf %10, %18 : vector<4x24x128xf32>
    %cst_13 = arith.constant 0.00664603291 : f32
    %20 = vector.broadcast %cst_13 : f32 to vector<4x24x128xf32>
    %21 = arith.mulf %20, %16 : vector<4x24x128xf32>
    %22 = arith.addf %13, %21 : vector<4x24x128xf32>
    %c0_14 = arith.constant 0 : index
    %c0_15 = arith.constant 0 : index
    %c1 = arith.constant 1 : index
    %23 = vector.load %arg1[%c0_14, %c0_15, %c1] : memref<4x24x136xf32, #tpu.memory_space<vmem>>, vector<4x24x128xf32>
    %c0_16 = arith.constant 0 : index
    %c0_17 = arith.constant 0 : index
    %c7 = arith.constant 7 : index
    %24 = vector.load %arg1[%c0_16, %c0_17, %c7] : memref<4x24x136xf32, #tpu.memory_space<vmem>>, vector<4x24x128xf32>
    %25 = arith.addf %23, %24 : vector<4x24x128xf32>
    %cst_18 = arith.constant 0.0238179229 : f32
    %26 = vector.broadcast %cst_18 : f32 to vector<4x24x128xf32>
    %27 = arith.mulf %26, %25 : vector<4x24x128xf32>
    %28 = arith.addf %19, %27 : vector<4x24x128xf32>
    %c0_19 = arith.constant 0 : index
    %c0_20 = arith.constant 0 : index
    %c0_21 = arith.constant 0 : index
    %29 = vector.load %arg1[%c0_19, %c0_20, %c0_21] : memref<4x24x136xf32, #tpu.memory_space<vmem>>, vector<4x24x128xf32>
    %c0_22 = arith.constant 0 : index
    %c0_23 = arith.constant 0 : index
    %c8 = arith.constant 8 : index
    %30 = vector.load %arg1[%c0_22, %c0_23, %c8] : memref<4x24x136xf32, #tpu.memory_space<vmem>>, vector<4x24x128xf32>
    %31 = arith.addf %29, %30 : vector<4x24x128xf32>
    %cst_24 = arith.constant 0.00332572707 : f32
    %32 = vector.broadcast %cst_24 : f32 to vector<4x24x128xf32>
    %33 = arith.mulf %32, %31 : vector<4x24x128xf32>
    %34 = arith.addf %28, %33 : vector<4x24x128xf32>
    %35 = vector.extract_strided_slice %22 {offsets = [0, 4, 0], sizes = [4, 16, 128], strides = [1, 1, 1]} : vector<4x24x128xf32> to vector<4x16x128xf32>
    %cst_25 = arith.constant 0.598256826 : f32
    %36 = vector.broadcast %cst_25 : f32 to vector<4x16x128xf32>
    %37 = arith.mulf %36, %35 : vector<4x16x128xf32>
    %38 = vector.extract_strided_slice %34 {offsets = [0, 4, 0], sizes = [4, 16, 128], strides = [1, 1, 1]} : vector<4x24x128xf32> to vector<4x16x128xf32>
    %cst_26 = arith.constant 0.299372405 : f32
    %39 = vector.broadcast %cst_26 : f32 to vector<4x16x128xf32>
    %40 = arith.mulf %39, %38 : vector<4x16x128xf32>
    %41 = arith.subf %37, %40 : vector<4x16x128xf32>
    %42 = vector.extract_strided_slice %22 {offsets = [0, 3, 0], sizes = [4, 16, 128], strides = [1, 1, 1]} : vector<4x24x128xf32> to vector<4x16x128xf32>
    %43 = vector.extract_strided_slice %22 {offsets = [0, 5, 0], sizes = [4, 16, 128], strides = [1, 1, 1]} : vector<4x24x128xf32> to vector<4x16x128xf32>
    %44 = arith.addf %42, %43 : vector<4x16x128xf32>
    %cst_27 = arith.constant 0.19422555 : f32
    %45 = vector.broadcast %cst_27 : f32 to vector<4x16x128xf32>
    %46 = arith.mulf %45, %44 : vector<4x16x128xf32>
    %47 = arith.addf %41, %46 : vector<4x16x128xf32>
    %48 = vector.extract_strided_slice %34 {offsets = [0, 3, 0], sizes = [4, 16, 128], strides = [1, 1, 1]} : vector<4x24x128xf32> to vector<4x16x128xf32>
    %49 = vector.extract_strided_slice %34 {offsets = [0, 5, 0], sizes = [4, 16, 128], strides = [1, 1, 1]} : vector<4x24x128xf32> to vector<4x16x128xf32>
    %50 = arith.addf %48, %49 : vector<4x16x128xf32>
    %cst_28 = arith.constant 0.225978151 : f32
    %51 = vector.broadcast %cst_28 : f32 to vector<4x16x128xf32>
    %52 = arith.mulf %51, %50 : vector<4x16x128xf32>
    %53 = arith.subf %47, %52 : vector<4x16x128xf32>
    %54 = vector.extract_strided_slice %22 {offsets = [0, 2, 0], sizes = [4, 16, 128], strides = [1, 1, 1]} : vector<4x24x128xf32> to vector<4x16x128xf32>
    %55 = vector.extract_strided_slice %22 {offsets = [0, 6, 0], sizes = [4, 16, 128], strides = [1, 1, 1]} : vector<4x24x128xf32> to vector<4x16x128xf32>
    %56 = arith.addf %54, %55 : vector<4x16x128xf32>
    %cst_29 = arith.constant 0.00664603291 : f32
    %57 = vector.broadcast %cst_29 : f32 to vector<4x16x128xf32>
    %58 = arith.mulf %57, %56 : vector<4x16x128xf32>
    %59 = arith.addf %53, %58 : vector<4x16x128xf32>
    %60 = vector.extract_strided_slice %34 {offsets = [0, 2, 0], sizes = [4, 16, 128], strides = [1, 1, 1]} : vector<4x24x128xf32> to vector<4x16x128xf32>
    %61 = vector.extract_strided_slice %34 {offsets = [0, 6, 0], sizes = [4, 16, 128], strides = [1, 1, 1]} : vector<4x24x128xf32> to vector<4x16x128xf32>
    %62 = arith.addf %60, %61 : vector<4x16x128xf32>
    %cst_30 = arith.constant 0.0971919894 : f32
    %63 = vector.broadcast %cst_30 : f32 to vector<4x16x128xf32>
    %64 = arith.mulf %63, %62 : vector<4x16x128xf32>
    %65 = arith.subf %59, %64 : vector<4x16x128xf32>
    %66 = vector.extract_strided_slice %34 {offsets = [0, 1, 0], sizes = [4, 16, 128], strides = [1, 1, 1]} : vector<4x24x128xf32> to vector<4x16x128xf32>
    %67 = vector.extract_strided_slice %34 {offsets = [0, 7, 0], sizes = [4, 16, 128], strides = [1, 1, 1]} : vector<4x24x128xf32> to vector<4x16x128xf32>
    %68 = arith.addf %66, %67 : vector<4x16x128xf32>
    %cst_31 = arith.constant 0.0238179229 : f32
    %69 = vector.broadcast %cst_31 : f32 to vector<4x16x128xf32>
    %70 = arith.mulf %69, %68 : vector<4x16x128xf32>
    %71 = arith.subf %65, %70 : vector<4x16x128xf32>
    %72 = vector.extract_strided_slice %34 {offsets = [0, 0, 0], sizes = [4, 16, 128], strides = [1, 1, 1]} : vector<4x24x128xf32> to vector<4x16x128xf32>
    %73 = vector.extract_strided_slice %34 {offsets = [0, 8, 0], sizes = [4, 16, 128], strides = [1, 1, 1]} : vector<4x24x128xf32> to vector<4x16x128xf32>
    %74 = arith.addf %72, %73 : vector<4x16x128xf32>
    %cst_32 = arith.constant 0.00332572707 : f32
    %75 = vector.broadcast %cst_32 : f32 to vector<4x16x128xf32>
    %76 = arith.mulf %75, %74 : vector<4x16x128xf32>
    %77 = arith.subf %71, %76 : vector<4x16x128xf32>
    %c0_33 = arith.constant 0 : index
    %c0_34 = arith.constant 0 : index
    %c0_35 = arith.constant 0 : index
    %78 = vector.load %arg2[%c0_33, %c0_34, %c0_35] : memref<4x16x128xf32, #tpu.memory_space<vmem>>, vector<4x16x128xf32>
    tpu.vector_store %arg2[%c0_33, %c0_34, %c0_35], %77 {strides = array<i32>} : memref<4x16x128xf32, #tpu.memory_space<vmem>>, vector<4x16x128xf32>,
    return
  }
  func.func @transform_0(%arg0: i32) -> (i32, i32, i32) {
    %c0_i32 = arith.constant 0 : i32
    %c0_i32_0 = arith.constant 0 : i32
    %c0_i32_1 = arith.constant 0 : i32
    return %arg0, %c0_i32, %c0_i32_0 : i32, i32, i32
  }
  func.func @transform_1(%arg0: i32) -> (i32, i32, i32) {
    %c0_i32 = arith.constant 0 : i32
    %c0_i32_0 = arith.constant 0 : i32
    %c0_i32_1 = arith.constant 0 : i32
    return %arg0, %c0_i32, %c0_i32_0 : i32, i32, i32
  }
}

</mosaic_0001>

<llo_original>
// kernel: tpu_custom_call.1
$region0: #{tpu_custom_call.1}
  #allocation0 [shape = 'u32[]', space=smem, size = 0x4, offset = 0x4, fixed_abs, tag = 'smem constant byte address 0x4 - core index']
  #allocation1 [shape = 'u32[72,128]{1,0:T(1,128)}', space=vmem, size = 0x9000, scoped, tag = 'internal scratch']
  %s0 = inlined_call_operand.hbm [shape: f32[8,24,136], index: 0, kind: input, shape index: {}]
  %s1 = inlined_call_operand.hbm [shape: f32[8,16,128], index: 1, kind: output, shape index: {}]
  %s2 = sld [smem:[#allocation0]]
  $region41: #{tpu_custom_call.1} parent=0
    _
  %s4 = ssub.s32 1, %s2
  %s5 = scalar_select 0, %s4, %s2
  $region1: #{tpu_custom_call.1} parent=0
    #allocation2 [shape = 'u8[196608]{0}', space=vmem, size = 0x30000, scoped, tag = 'input window, operand 0']
    #allocation3 [shape = 's32[2]{0}', space=sflag, size = 0x8, scoped, tag = 'scoped memory for tpu_custom_call.1']
    #allocation4 [shape = 's32[2]{0}', space=sflag, size = 0x8, scoped, tag = 'scoped memory for tpu_custom_call.1']
    #allocation5 [shape = 'u8[65536]{0}', space=vmem, size = 0x10000, scoped, tag = 'output window, operand 0']
    %6 = vsyncpa [#allocation3], 0
    %s7 = scalar_lea.sflag [#allocation3], 1
    %8 = vsyncpa %s7, 0
    %9 = vsyncpa [#allocation4], 0
    %s10 = scalar_lea.sflag [#allocation4], 1
    %11 = vsyncpa %s10, 0
    loop: start=0, step=1, limit=4
    $region2: #{tpu_custom_call.1} parent=1 // loop_pre_header
      _
    $region3: #{tpu_custom_call.1} parent=1 // loop_header
      %s13 = sphi 0, %s17
      %p14 = scmp.ge.s32.totalorder %s13, 4
      %s23 = sphi 0, %s25
      %s26 = sphi 0, %s23
      %s27 = sphi 0, %s26
      %s43 = sphi 0, %s27
      %s49 = sphi 0, %s51
      %s52 = sphi 0, %s49
      %s53 = sphi 0, %s52
      %s69 = sphi 0, %s53
    $region4: #{tpu_custom_call.1} parent=1 // loop_header_branch
      %16 = sbr.rel (%p14) target = $region8
    $region5: #{tpu_custom_call.1} parent=1 // loop_body
      %s18 = ssub.s32 %s13, 1
      %s19 = ssub.s32 %s13, 2
      %s20 = sadd.s32 %s13, 1
      %s21 = ssub.s32 %s13, %s20
      %p22 = scmp.eq.s32.totalorder %s21, 0
      %s24 = sadd.s32 %s23, 1
      %s25 = scalar_select %p22, %s23, %s24
      %p28 = pneg %p22
      %p29 = scmp.eq.s32.totalorder %s13, 1
      %p30 = por %p28, %p29
      %p31 = scmp.ne.s32.totalorder %s23, %s26
      %p32 = scmp.eq.s32.totalorder %s13, 0
      %p33 = por %p31, %p32
      %p34 = scmp.ne.s32.totalorder %s23, %s26
      %p35 = scmp.eq.s32.totalorder %s18, 1
      %p36 = por %p34, %p35
      %p37 = scmp.ne.s32.totalorder %s26, %s27
      %p38 = scmp.eq.s32.totalorder %s18, 0
      %p39 = por %p37, %p38
      %p40 = scmp.ne.s32.totalorder %s26, %s27
      %p41 = scmp.eq.s32.totalorder %s19, 1
      %p42 = por %p40, %p41
      %p44 = scmp.ne.s32.totalorder %s27, %s43
      %p45 = scmp.eq.s32.totalorder %s19, 0
      %p46 = por %p44, %p45
      %s47 = ssub.s32 %s13, %s20
      %p48 = scmp.eq.s32.totalorder %s47, 0
      %s50 = sadd.s32 %s49, 1
      %s51 = scalar_select %p48, %s49, %s50
      %p54 = pneg %p48
      %p55 = scmp.eq.s32.totalorder %s13, 1
      %p56 = por %p54, %p55
      %p57 = scmp.ne.s32.totalorder %s49, %s52
      %p58 = scmp.eq.s32.totalorder %s13, 0
      %p59 = por %p57, %p58
      %p60 = scmp.ne.s32.totalorder %s49, %s52
      %p61 = scmp.eq.s32.totalorder %s18, 1
      %p62 = por %p60, %p61
      %p63 = scmp.ne.s32.totalorder %s52, %s53
      %p64 = scmp.eq.s32.totalorder %s18, 0
      %p65 = por %p63, %p64
      %p66 = scmp.ne.s32.totalorder %s52, %s53
      %p67 = scmp.eq.s32.totalorder %s19, 1
      %p68 = por %p66, %p67
      %p70 = scmp.ne.s32.totalorder %s53, %s69
      %p71 = scmp.eq.s32.totalorder %s19, 0
      %p72 = por %p70, %p71
      %p73 = scmp.le.s32.totalorder 1, %s13
      %p74 = scmp.lt.s32.totalorder %s13, 3
      %p75 = pnand %p73, %p74
      %p76 = pneg %p75
      // Predicated region
      $region9: #{tpu_custom_call.1} parent=5 // pred_check
        _
      $region10: #{tpu_custom_call.1} parent=5 // pred_check_branch
        %78 = sbr.rel (%p75) target = $region12
      $region11: #{tpu_custom_call.1} parent=5 // pred_region
        %s79 = ssub.s32 %s13, 1
      $region12: #{tpu_custom_call.1} parent=5 // pred_fallthru
        _
      %p80 = scmp.lt.s32.totalorder %s13, 2
      // Predicated region
      $region13: #{tpu_custom_call.1} parent=5 // pred_check
        %p81 = pneg %p80
      $region14: #{tpu_custom_call.1} parent=5 // pred_check_branch
        %83 = sbr.rel (%p81) target = $region16
      $region15: #{tpu_custom_call.1} parent=5 // pred_region
        // Predicated region
        $region17: #{tpu_custom_call.1} parent=15 // pred_check
          %p84 = pneg %p33
        $region18: #{tpu_custom_call.1} parent=15 // pred_check_branch
          %86 = sbr.rel (%p84) target = $region20
        $region19: #{tpu_custom_call.1} parent=15 // pred_region
          %s87 = sand.u32 %s23, 1
          %s88 = scalar_lea.sflag [#allocation3], %s87
          %s89 = sand.u32 %s23, 1
          %s90 = smul.addr %s89, 192
          %s91 = scalar_lea.vmem [#allocation2], %s90
          %s92 = smul.u32 4, %s13
          %94 = vsyncadd %s88, 0
          %s95 = smul.addr %s92, 6
          %s96 = smul.addr %s95, 8
          %s97 = scalar_lea.hbm %s0, %s96
          %s98 = sshll.u32 %s97, 4
          %s99 = int_to_ptr.hbm [resolvable:$true] %s98
          %s100 = sshll.u32 %s91, 4
          %s101 = int_to_ptr.vmem [resolvable:$true] %s100
          %106 = dma.hbm_to_vmem [thread:$0]  %s99, 3072, %s101, %s88, 256, 256, 16
        $region20: #{tpu_custom_call.1} parent=15 // pred_fallthru
          _
      $region16: #{tpu_custom_call.1} parent=5 // pred_fallthru
        _
      %p107 = scmp.le.s32.totalorder 1, %s13
      %p108 = scmp.lt.s32.totalorder %s13, 3
      %p109 = pnand %p107, %p108
      %p110 = pneg %p109
      // Predicated region
      $region21: #{tpu_custom_call.1} parent=5 // pred_check
        _
      $region22: #{tpu_custom_call.1} parent=5 // pred_check_branch
        %112 = sbr.rel (%p109) target = $region24
      $region23: #{tpu_custom_call.1} parent=5 // pred_region
        %s113 = ssub.s32 %s13, 1
        %s114 = sand.u32 %s26, 1
        %s115 = scalar_lea.sflag [#allocation3], %s114
        %s116 = sand.u32 %s26, 1
        %s117 = smul.addr %s116, 192
        %s118 = scalar_lea.vmem [#allocation2], %s117
        // Predicated region
        $region25: #{tpu_custom_call.1} parent=23 // pred_check
          %p119 = pneg %p39
        $region26: #{tpu_custom_call.1} parent=23 // pred_check_branch
          %121 = sbr.rel (%p119) target = $region28
        $region27: #{tpu_custom_call.1} parent=23 // pred_region
          %123 = dma.done %s115, 3072
        $region28: #{tpu_custom_call.1} parent=23 // pred_fallthru
          _
        %s124 = sand.u32 %s26, 1
        %s125 = scalar_lea.sflag [#allocation3], %s124
        %s126 = sand.u32 %s26, 1
        %s127 = smul.addr %s126, 192
        %s128 = scalar_lea.vmem [#allocation2], %s127
        %p129 = pneg %p39
        %p130 = pneg %p36
        %p131 = pneg %p65
        %p132 = pneg %p62
        %s133 = sand.u32 %s52, 1
        %s134 = scalar_lea.sflag [#allocation4], %s133
        %s135 = sand.u32 %s52, 1
        %s136 = smul.addr %s135, 64
        %s137 = scalar_lea.vmem [#allocation5], %s136
        %s138 = smul.u32 4, %s18
        %s139 = smul.u32 4, %s18
        %v140 = vld [vmem:[%s118] sm:$0xff]
        %v141 = vld [vmem:[%s118 + $0x8] sm:$0xff]
        %v142 = vld [vmem:[%s118 + $0x10] sm:$0xff]
        %v143 = vld [vmem:[%s118 + $0x18] sm:$0xff]
        %v144 = vld [vmem:[%s118 + $0x20] sm:$0xff]
        %v145 = vld [vmem:[%s118 + $0x28] sm:$0xff]
        %v146 = vld [vmem:[%s118 + $0x30] sm:$0xff]
        %v147 = vld [vmem:[%s118 + $0x38] sm:$0xff]
        %v148 = vld [vmem:[%s118 + $0x40] sm:$0xff]
        %v149 = vld [vmem:[%s118 + $0x48] sm:$0xff]
        %v150 = vld [vmem:[%s118 + $0x50] sm:$0xff]
        %v151 = vld [vmem:[%s118 + $0x58] sm:$0xff]
        %v152 = vld [vmem:[%s118 + $0x60] sm:$0xff]
        %v153 = vld [vmem:[%s118 + $0x68] sm:$0xff]
        %v154 = vld [vmem:[%s118 + $0x70] sm:$0xff]
        %v155 = vld [vmem:[%s118 + $0x78] sm:$0xff]
        %v156 = vld [vmem:[%s118 + $0x80] sm:$0xff]
        %v157 = vld [vmem:[%s118 + $0x88] sm:$0xff]
        %v158 = vld [vmem:[%s118 + $0x90] sm:$0xff]
        %v159 = vld [vmem:[%s118 + $0x98] sm:$0xff]
        %v160 = vld [vmem:[%s118 + $0xa0] sm:$0xff]
        %v161 = vld [vmem:[%s118 + $0xa8] sm:$0xff]
        %v162 = vld [vmem:[%s118 + $0xb0] sm:$0xff]
        %v163 = vld [vmem:[%s118 + $0xb8] sm:$0xff]
        %v164 = vmul.f32 %v140, 0.5982568
        %v165 = vmul.f32 %v141, 0.5982568
        %v166 = vmul.f32 %v142, 0.5982568
        %v167 = vmul.f32 %v143, 0.5982568
        %v168 = vmul.f32 %v144, 0.5982568
        %v169 = vmul.f32 %v145, 0.5982568
        %v170 = vmul.f32 %v146, 0.5982568
        %v171 = vmul.f32 %v147, 0.5982568
        %v172 = vmul.f32 %v148, 0.5982568
        %v173 = vmul.f32 %v149, 0.5982568
        %v174 = vmul.f32 %v150, 0.5982568
        %v175 = vmul.f32 %v151, 0.5982568
        %v176 = vmul.f32 %v152, 0.5982568
        %v177 = vmul.f32 %v153, 0.5982568
        %v178 = vmul.f32 %v154, 0.5982568
        %v179 = vmul.f32 %v155, 0.5982568
        %v180 = vmul.f32 %v156, 0.5982568
        %v181 = vmul.f32 %v157, 0.5982568
        %v182 = vmul.f32 %v158, 0.5982568
        %v183 = vmul.f32 %v159, 0.5982568
        %v184 = vmul.f32 %v160, 0.5982568
        %v185 = vmul.f32 %v161, 0.5982568
        %v186 = vmul.f32 %v162, 0.5982568
        %v187 = vmul.f32 %v163, 0.5982568
        %v188 = vmul.f32 %v140, 0.2993724
        %v189 = vmul.f32 %v141, 0.2993724
        %v190 = vmul.f32 %v142, 0.2993724
        %v191 = vmul.f32 %v143, 0.2993724
        %v192 = vmul.f32 %v144, 0.2993724
        %v193 = vmul.f32 %v145, 0.2993724
        %v194 = vmul.f32 %v146, 0.2993724
        %v195 = vmul.f32 %v147, 0.2993724
        %v196 = vmul.f32 %v148, 0.2993724
        %v197 = vmul.f32 %v149, 0.2993724
        %v198 = vmul.f32 %v150, 0.2993724
        %v199 = vmul.f32 %v151, 0.2993724
        %v200 = vmul.f32 %v152, 0.2993724
        %v201 = vmul.f32 %v153, 0.2993724
        %v202 = vmul.f32 %v154, 0.2993724
        %v203 = vmul.f32 %v155, 0.2993724
        %v204 = vmul.f32 %v156, 0.2993724
        %v205 = vmul.f32 %v157, 0.2993724
        %v206 = vmul.f32 %v158, 0.2993724
        %v207 = vmul.f32 %v159, 0.2993724
        %v208 = vmul.f32 %v160, 0.2993724
        %v209 = vmul.f32 %v161, 0.2993724
        %v210 = vmul.f32 %v162, 0.2993724
        %v211 = vmul.f32 %v163, 0.2993724
        %236 = vrot.lane.b32.xlu0 %v140, 126
        %v237 = vpop.permute.xlu0 %236
        %238 = vrot.lane.b32.xlu0 %v141, 126
        %v239 = vpop.permute.xlu0 %238
        %240 = vrot.lane.b32.xlu0 %v142, 126
        %v241 = vpop.permute.xlu0 %240
        %242 = vrot.lane.b32.xlu0 %v143, 126
        %v243 = vpop.permute.xlu0 %242
        %244 = vrot.lane.b32.xlu0 %v144, 126
        %v245 = vpop.permute.xlu0 %244
        %246 = vrot.lane.b32.xlu0 %v145, 126
        %v247 = vpop.permute.xlu0 %246
        %248 = vrot.lane.b32.xlu0 %v146, 126
        %v249 = vpop.permute.xlu0 %248
        %250 = vrot.lane.b32.xlu0 %v147, 126
        %v251 = vpop.permute.xlu0 %250
        %252 = vrot.lane.b32.xlu0 %v148, 126
        %v253 = vpop.permute.xlu0 %252
        %254 = vrot.lane.b32.xlu0 %v149, 126
        %v255 = vpop.permute.xlu0 %254
        %256 = vrot.lane.b32.xlu0 %v150, 126
        %v257 = vpop.permute.xlu0 %256
        %258 = vrot.lane.b32.xlu0 %v151, 126
        %v259 = vpop.permute.xlu0 %258
        %260 = vrot.lane.b32.xlu0 %v152, 126
        %v261 = vpop.permute.xlu0 %260
        %262 = vrot.lane.b32.xlu0 %v153, 126
        %v263 = vpop.permute.xlu0 %262
        %264 = vrot.lane.b32.xlu0 %v154, 126
        %v265 = vpop.permute.xlu0 %264
        %266 = vrot.lane.b32.xlu0 %v155, 126
        %v267 = vpop.permute.xlu0 %266
        %268 = vrot.lane.b32.xlu0 %v156, 126
        %v269 = vpop.permute.xlu0 %268
        %270 = vrot.lane.b32.xlu0 %v157, 126
        %v271 = vpop.permute.xlu0 %270
        %272 = vrot.lane.b32.xlu0 %v158, 126
        %v273 = vpop.permute.xlu0 %272
        %274 = vrot.lane.b32.xlu0 %v159, 126
        %v275 = vpop.permute.xlu0 %274
        %276 = vrot.lane.b32.xlu0 %v160, 126
        %v277 = vpop.permute.xlu0 %276
        %278 = vrot.lane.b32.xlu0 %v161, 126
        %v279 = vpop.permute.xlu0 %278
        %280 = vrot.lane.b32.xlu0 %v162, 126
        %v281 = vpop.permute.xlu0 %280
        %282 = vrot.lane.b32.xlu0 %v163, 126
        %v283 = vpop.permute.xlu0 %282
        %vm284 = vcmask 1031168
        %v285 = vsel %vm284, %v237, %v239
        %v286 = vsel %vm284, %v241, %v243
        %v287 = vsel %vm284, %v245, %v247
        %v288 = vsel %vm284, %v249, %v251
        %v289 = vsel %vm284, %v253, %v255
        %v290 = vsel %vm284, %v257, %v259
        %v291 = vsel %vm284, %v261, %v263
        %v292 = vsel %vm284, %v265, %v267
        %v293 = vsel %vm284, %v269, %v271
        %v294 = vsel %vm284, %v273, %v275
        %v295 = vsel %vm284, %v277, %v279
        %v296 = vsel %vm284, %v281, %v283
        %v321 = vadd.f32 %v140, %v285
        %v322 = vadd.f32 %v141, %v239
        %v323 = vadd.f32 %v142, %v286
        %v324 = vadd.f32 %v143, %v243
        %v325 = vadd.f32 %v144, %v287
        %v326 = vadd.f32 %v145, %v247
        %v327 = vadd.f32 %v146, %v288
        %v328 = vadd.f32 %v147, %v251
        %v329 = vadd.f32 %v148, %v289
        %v330 = vadd.f32 %v149, %v255
        %v331 = vadd.f32 %v150, %v290
        %v332 = vadd.f32 %v151, %v259
        %v333 = vadd.f32 %v152, %v291
        %v334 = vadd.f32 %v153, %v263
        %v335 = vadd.f32 %v154, %v292
        %v336 = vadd.f32 %v155, %v267
        %v337 = vadd.f32 %v156, %v293
        %v338 = vadd.f32 %v157, %v271
        %v339 = vadd.f32 %v158, %v294
        %v340 = vadd.f32 %v159, %v275
        %v341 = vadd.f32 %v160, %v295
        %v342 = vadd.f32 %v161, %v279
        %v343 = vadd.f32 %v162, %v296
        %v344 = vadd.f32 %v163, %v283
        %v345 = vmul.f32 %v321, 0.22597815
        %v346 = vmul.f32 %v322, 0.22597815
        %v347 = vmul.f32 %v323, 0.22597815
        %v348 = vmul.f32 %v324, 0.22597815
        %v349 = vmul.f32 %v325, 0.22597815
        %v350 = vmul.f32 %v326, 0.22597815
        %v351 = vmul.f32 %v327, 0.22597815
        %v352 = vmul.f32 %v328, 0.22597815
        %v353 = vmul.f32 %v329, 0.22597815
        %v354 = vmul.f32 %v330, 0.22597815
        %v355 = vmul.f32 %v331, 0.22597815
        %v356 = vmul.f32 %v332, 0.22597815
        %v357 = vmul.f32 %v333, 0.22597815
        %v358 = vmul.f32 %v334, 0.22597815
        %v359 = vmul.f32 %v335, 0.22597815
        %v360 = vmul.f32 %v336, 0.22597815
        %v361 = vmul.f32 %v337, 0.22597815
        %v362 = vmul.f32 %v338, 0.22597815
        %v363 = vmul.f32 %v339, 0.22597815
        %v364 = vmul.f32 %v340, 0.22597815
        %v365 = vmul.f32 %v341, 0.22597815
        %v366 = vmul.f32 %v342, 0.22597815
        %v367 = vmul.f32 %v343, 0.22597815
        %v368 = vmul.f32 %v344, 0.22597815
        %393 = vrot.lane.b32.xlu0 %v345, 1
        %v394 = vpop.permute.xlu0 %393
        %395 = vrot.lane.b32.xlu0 %v346, 1
        %v396 = vpop.permute.xlu0 %395
        %397 = vrot.lane.b32.xlu0 %v347, 1
        %v398 = vpop.permute.xlu0 %397
        %399 = vrot.lane.b32.xlu0 %v348, 1
        %v400 = vpop.permute.xlu0 %399
        %401 = vrot.lane.b32.xlu0 %v349, 1
        %v402 = vpop.permute.xlu0 %401
        %403 = vrot.lane.b32.xlu0 %v350, 1
        %v404 = vpop.permute.xlu0 %403
        %405 = vrot.lane.b32.xlu0 %v351, 1
        %v406 = vpop.permute.xlu0 %405
        %407 = vrot.lane.b32.xlu0 %v352, 1
        %v408 = vpop.permute.xlu0 %407
        %409 = vrot.lane.b32.xlu0 %v353, 1
        %v410 = vpop.permute.xlu0 %409
        %411 = vrot.lane.b32.xlu0 %v354, 1
        %v412 = vpop.permute.xlu0 %411
        %413 = vrot.lane.b32.xlu0 %v355, 1
        %v414 = vpop.permute.xlu0 %413
        %415 = vrot.lane.b32.xlu0 %v356, 1
        %v416 = vpop.permute.xlu0 %415
        %417 = vrot.lane.b32.xlu0 %v357, 1
        %v418 = vpop.permute.xlu0 %417
        %419 = vrot.lane.b32.xlu0 %v358, 1
        %v420 = vpop.permute.xlu0 %419
        %421 = vrot.lane.b32.xlu0 %v359, 1
        %v422 = vpop.permute.xlu0 %421
        %423 = vrot.lane.b32.xlu0 %v360, 1
        %v424 = vpop.permute.xlu0 %423
        %425 = vrot.lane.b32.xlu0 %v361, 1
        %v426 = vpop.permute.xlu0 %425
        %427 = vrot.lane.b32.xlu0 %v362, 1
        %v428 = vpop.permute.xlu0 %427
        %429 = vrot.lane.b32.xlu0 %v363, 1
        %v430 = vpop.permute.xlu0 %429
        %431 = vrot.lane.b32.xlu0 %v364, 1
        %v432 = vpop.permute.xlu0 %431
        %433 = vrot.lane.b32.xlu0 %v365, 1
        %v434 = vpop.permute.xlu0 %433
        %435 = vrot.lane.b32.xlu0 %v366, 1
        %v436 = vpop.permute.xlu0 %435
        %437 = vrot.lane.b32.xlu0 %v367, 1
        %v438 = vpop.permute.xlu0 %437
        %439 = vrot.lane.b32.xlu0 %v368, 1
        %v440 = vpop.permute.xlu0 %439
        %vm441 = vcmask 7168
        %v442 = vsel %vm441, %v394, %v396
        %v443 = vsel %vm441, %v398, %v400
        %v444 = vsel %vm441, %v402, %v404
        %v445 = vsel %vm441, %v406, %v408
        %v446 = vsel %vm441, %v410, %v412
        %v447 = vsel %vm441, %v414, %v416
        %v448 = vsel %vm441, %v418, %v420
        %v449 = vsel %vm441, %v422, %v424
        %v450 = vsel %vm441, %v426, %v428
        %v451 = vsel %vm441, %v430, %v432
        %v452 = vsel %vm441, %v434, %v436
        %v453 = vsel %vm441, %v438, %v440
        %v478 = vadd.f32 %v188, %v394
        %v479 = vadd.f32 %v189, %v442
        %v480 = vadd.f32 %v190, %v398
        %v481 = vadd.f32 %v191, %v443
        %v482 = vadd.f32 %v192, %v402
        %v483 = vadd.f32 %v193, %v444
        %v484 = vadd.f32 %v194, %v406
        %v485 = vadd.f32 %v195, %v445
        %v486 = vadd.f32 %v196, %v410
        %v487 = vadd.f32 %v197, %v446
        %v488 = vadd.f32 %v198, %v414
        %v489 = vadd.f32 %v199, %v447
        %v490 = vadd.f32 %v200, %v418
        %v491 = vadd.f32 %v201, %v448
        %v492 = vadd.f32 %v202, %v422
        %v493 = vadd.f32 %v203, %v449
        %v494 = vadd.f32 %v204, %v426
        %v495 = vadd.f32 %v205, %v450
        %v496 = vadd.f32 %v206, %v430
        %v497 = vadd.f32 %v207, %v451
        %v498 = vadd.f32 %v208, %v434
        %v499 = vadd.f32 %v209, %v452
        %v500 = vadd.f32 %v210, %v438
        %v501 = vadd.f32 %v211, %v453
        %v502 = vmul.f32 %v321, 0.19422555
        %v503 = vmul.f32 %v322, 0.19422555
        %v504 = vmul.f32 %v323, 0.19422555
        %v505 = vmul.f32 %v324, 0.19422555
        %v506 = vmul.f32 %v325, 0.19422555
        %v507 = vmul.f32 %v326, 0.19422555
        %v508 = vmul.f32 %v327, 0.19422555
        %v509 = vmul.f32 %v328, 0.19422555
        %v510 = vmul.f32 %v329, 0.19422555
        %v511 = vmul.f32 %v330, 0.19422555
        %v512 = vmul.f32 %v331, 0.19422555
        %v513 = vmul.f32 %v332, 0.19422555
        %v514 = vmul.f32 %v333, 0.19422555
        %v515 = vmul.f32 %v334, 0.19422555
        %v516 = vmul.f32 %v335, 0.19422555
        %v517 = vmul.f32 %v336, 0.19422555
        %v518 = vmul.f32 %v337, 0.19422555
        %v519 = vmul.f32 %v338, 0.19422555
        %v520 = vmul.f32 %v339, 0.19422555
        %v521 = vmul.f32 %v340, 0.19422555
        %v522 = vmul.f32 %v341, 0.19422555
        %v523 = vmul.f32 %v342, 0.19422555
        %v524 = vmul.f32 %v343, 0.19422555
        %v525 = vmul.f32 %v344, 0.19422555
        %550 = vrot.lane.b32.xlu0 %v502, 1
        %v551 = vpop.permute.xlu0 %550
        %552 = vrot.lane.b32.xlu0 %v503, 1
        %v553 = vpop.permute.xlu0 %552
        %554 = vrot.lane.b32.xlu0 %v504, 1
        %v555 = vpop.permute.xlu0 %554
        %556 = vrot.lane.b32.xlu0 %v505, 1
        %v557 = vpop.permute.xlu0 %556
        %558 = vrot.lane.b32.xlu0 %v506, 1
        %v559 = vpop.permute.xlu0 %558
        %560 = vrot.lane.b32.xlu0 %v507, 1
        %v561 = vpop.permute.xlu0 %560
        %562 = vrot.lane.b32.xlu0 %v508, 1
        %v563 = vpop.permute.xlu0 %562
        %564 = vrot.lane.b32.xlu0 %v509, 1
        %v565 = vpop.permute.xlu0 %564
        %566 = vrot.lane.b32.xlu0 %v510, 1
        %v567 = vpop.permute.xlu0 %566
        %568 = vrot.lane.b32.xlu0 %v511, 1
        %v569 = vpop.permute.xlu0 %568
        %570 = vrot.lane.b32.xlu0 %v512, 1
        %v571 = vpop.permute.xlu0 %570
        %572 = vrot.lane.b32.xlu0 %v513, 1
        %v573 = vpop.permute.xlu0 %572
        %574 = vrot.lane.b32.xlu0 %v514, 1
        %v575 = vpop.permute.xlu0 %574
        %576 = vrot.lane.b32.xlu0 %v515, 1
        %v577 = vpop.permute.xlu0 %576
        %578 = vrot.lane.b32.xlu0 %v516, 1
        %v579 = vpop.permute.xlu0 %578
        %580 = vrot.lane.b32.xlu0 %v517, 1
        %v581 = vpop.permute.xlu0 %580
        %582 = vrot.lane.b32.xlu0 %v518, 1
        %v583 = vpop.permute.xlu0 %582
        %584 = vrot.lane.b32.xlu0 %v519, 1
        %v585 = vpop.permute.xlu0 %584
        %586 = vrot.lane.b32.xlu0 %v520, 1
        %v587 = vpop.permute.xlu0 %586
        %588 = vrot.lane.b32.xlu0 %v521, 1
        %v589 = vpop.permute.xlu0 %588
        %590 = vrot.lane.b32.xlu0 %v522, 1
        %v591 = vpop.permute.xlu0 %590
        %592 = vrot.lane.b32.xlu0 %v523, 1
        %v593 = vpop.permute.xlu0 %592
        %594 = vrot.lane.b32.xlu0 %v524, 1
        %v595 = vpop.permute.xlu0 %594
        %596 = vrot.lane.b32.xlu0 %v525, 1
        %v597 = vpop.permute.xlu0 %596
        %v598 = vsel %vm441, %v551, %v553
        %v599 = vsel %vm441, %v555, %v557
        %v600 = vsel %vm441, %v559, %v561
        %v601 = vsel %vm441, %v563, %v565
        %v602 = vsel %vm441, %v567, %v569
        %v603 = vsel %vm441, %v571, %v573
        %v604 = vsel %vm441, %v575, %v577
        %v605 = vsel %vm441, %v579, %v581
        %v606 = vsel %vm441, %v583, %v585
        %v607 = vsel %vm441, %v587, %v589
        %v608 = vsel %vm441, %v591, %v593
        %v609 = vsel %vm441, %v595, %v597
        %v634 = vadd.f32 %v164, %v551
        %v635 = vadd.f32 %v165, %v598
        %v636 = vadd.f32 %v166, %v555
        %v637 = vadd.f32 %v167, %v599
        %v638 = vadd.f32 %v168, %v559
        %v639 = vadd.f32 %v169, %v600
        %v640 = vadd.f32 %v170, %v563
        %v641 = vadd.f32 %v171, %v601
        %v642 = vadd.f32 %v172, %v567
        %v643 = vadd.f32 %v173, %v602
        %v644 = vadd.f32 %v174, %v571
        %v645 = vadd.f32 %v175, %v603
        %v646 = vadd.f32 %v176, %v575
        %v647 = vadd.f32 %v177, %v604
        %v648 = vadd.f32 %v178, %v579
        %v649 = vadd.f32 %v179, %v605
        %v650 = vadd.f32 %v180, %v583
        %v651 = vadd.f32 %v181, %v606
        %v652 = vadd.f32 %v182, %v587
        %v653 = vadd.f32 %v183, %v607
        %v654 = vadd.f32 %v184, %v591
        %v655 = vadd.f32 %v185, %v608
        %v656 = vadd.f32 %v186, %v595
        %v657 = vadd.f32 %v187, %v609
        %658 = vrot.lane.b32.xlu0 %v140, 124
        %v659 = vpop.permute.xlu0 %658
        %660 = vrot.lane.b32.xlu0 %v141, 124
        %v661 = vpop.permute.xlu0 %660
        %662 = vrot.lane.b32.xlu0 %v142, 124
        %v663 = vpop.permute.xlu0 %662
        %664 = vrot.lane.b32.xlu0 %v143, 124
        %v665 = vpop.permute.xlu0 %664
        %666 = vrot.lane.b32.xlu0 %v144, 124
        %v667 = vpop.permute.xlu0 %666
        %668 = vrot.lane.b32.xlu0 %v145, 124
        %v669 = vpop.permute.xlu0 %668
        %670 = vrot.lane.b32.xlu0 %v146, 124
        %v671 = vpop.permute.xlu0 %670
        %672 = vrot.lane.b32.xlu0 %v147, 124
        %v673 = vpop.permute.xlu0 %672
        %674 = vrot.lane.b32.xlu0 %v148, 124
        %v675 = vpop.permute.xlu0 %674
        %676 = vrot.lane.b32.xlu0 %v149, 124
        %v677 = vpop.permute.xlu0 %676
        %678 = vrot.lane.b32.xlu0 %v150, 124
        %v679 = vpop.permute.xlu0 %678
        %680 = vrot.lane.b32.xlu0 %v151, 124
        %v681 = vpop.permute.xlu0 %680
        %682 = vrot.lane.b32.xlu0 %v152, 124
        %v683 = vpop.permute.xlu0 %682
        %684 = vrot.lane.b32.xlu0 %v153, 124
        %v685 = vpop.permute.xlu0 %684
        %686 = vrot.lane.b32.xlu0 %v154, 124
        %v687 = vpop.permute.xlu0 %686
        %688 = vrot.lane.b32.xlu0 %v155, 124
        %v689 = vpop.permute.xlu0 %688
        %690 = vrot.lane.b32.xlu0 %v156, 124
        %v691 = vpop.permute.xlu0 %690
        %692 = vrot.lane.b32.xlu0 %v157, 124
        %v693 = vpop.permute.xlu0 %692
        %694 = vrot.lane.b32.xlu0 %v158, 124
        %v695 = vpop.permute.xlu0 %694
        %696 = vrot.lane.b32.xlu0 %v159, 124
        %v697 = vpop.permute.xlu0 %696
        %698 = vrot.lane.b32.xlu0 %v160, 124
        %v699 = vpop.permute.xlu0 %698
        %700 = vrot.lane.b32.xlu0 %v161, 124
        %v701 = vpop.permute.xlu0 %700
        %702 = vrot.lane.b32.xlu0 %v162, 124
        %v703 = vpop.permute.xlu0 %702
        %704 = vrot.lane.b32.xlu0 %v163, 124
        %v705 = vpop.permute.xlu0 %704
        %vm706 = vcmask 1014784
        %v707 = vsel %vm706, %v659, %v661
        %v708 = vsel %vm706, %v663, %v665
        %v709 = vsel %vm706, %v667, %v669
        %v710 = vsel %vm706, %v671, %v673
        %v711 = vsel %vm706, %v675, %v677
        %v712 = vsel %vm706, %v679, %v681
        %v713 = vsel %vm706, %v683, %v685
        %v714 = vsel %vm706, %v687, %v689
        %v715 = vsel %vm706, %v691, %v693
        %v716 = vsel %vm706, %v695, %v697
        %v717 = vsel %vm706, %v699, %v701
        %v718 = vsel %vm706, %v703, %v705
        %v743 = vadd.f32 %v140, %v707
        %v744 = vadd.f32 %v141, %v661
        %v745 = vadd.f32 %v142, %v708
        %v746 = vadd.f32 %v143, %v665
        %v747 = vadd.f32 %v144, %v709
        %v748 = vadd.f32 %v145, %v669
        %v749 = vadd.f32 %v146, %v710
        %v750 = vadd.f32 %v147, %v673
        %v751 = vadd.f32 %v148, %v711
        %v752 = vadd.f32 %v149, %v677
        %v753 = vadd.f32 %v150, %v712
        %v754 = vadd.f32 %v151, %v681
        %v755 = vadd.f32 %v152, %v713
        %v756 = vadd.f32 %v153, %v685
        %v757 = vadd.f32 %v154, %v714
        %v758 = vadd.f32 %v155, %v689
        %v759 = vadd.f32 %v156, %v715
        %v760 = vadd.f32 %v157, %v693
        %v761 = vadd.f32 %v158, %v716
        %v762 = vadd.f32 %v159, %v697
        %v763 = vadd.f32 %v160, %v717
        %v764 = vadd.f32 %v161, %v701
        %v765 = vadd.f32 %v162, %v718
        %v766 = vadd.f32 %v163, %v705
        %v767 = vmul.f32 %v743, 0.09719199
        %v768 = vmul.f32 %v744, 0.09719199
        %v769 = vmul.f32 %v745, 0.09719199
        %v770 = vmul.f32 %v746, 0.09719199
        %v771 = vmul.f32 %v747, 0.09719199
        %v772 = vmul.f32 %v748, 0.09719199
        %v773 = vmul.f32 %v749, 0.09719199
        %v774 = vmul.f32 %v750, 0.09719199
        %v775 = vmul.f32 %v751, 0.09719199
        %v776 = vmul.f32 %v752, 0.09719199
        %v777 = vmul.f32 %v753, 0.09719199
        %v778 = vmul.f32 %v754, 0.09719199
        %v779 = vmul.f32 %v755, 0.09719199
        %v780 = vmul.f32 %v756, 0.09719199
        %v781 = vmul.f32 %v757, 0.09719199
        %v782 = vmul.f32 %v758, 0.09719199
        %v783 = vmul.f32 %v759, 0.09719199
        %v784 = vmul.f32 %v760, 0.09719199
        %v785 = vmul.f32 %v761, 0.09719199
        %v786 = vmul.f32 %v762, 0.09719199
        %v787 = vmul.f32 %v763, 0.09719199
        %v788 = vmul.f32 %v764, 0.09719199
        %v789 = vmul.f32 %v765, 0.09719199
        %v790 = vmul.f32 %v766, 0.09719199
        %815 = vrot.lane.b32.xlu0 %v767, 2
        %v816 = vpop.permute.xlu0 %815
        %817 = vrot.lane.b32.xlu0 %v768, 2
        %v818 = vpop.permute.xlu0 %817
        %819 = vrot.lane.b32.xlu0 %v769, 2
        %v820 = vpop.permute.xlu0 %819
        %821 = vrot.lane.b32.xlu0 %v770, 2
        %v822 = vpop.permute.xlu0 %821
        %823 = vrot.lane.b32.xlu0 %v771, 2
        %v824 = vpop.permute.xlu0 %823
        %825 = vrot.lane.b32.xlu0 %v772, 2
        %v826 = vpop.permute.xlu0 %825
        %827 = vrot.lane.b32.xlu0 %v773, 2
        %v828 = vpop.permute.xlu0 %827
        %829 = vrot.lane.b32.xlu0 %v774, 2
        %v830 = vpop.permute.xlu0 %829
        %831 = vrot.lane.b32.xlu0 %v775, 2
        %v832 = vpop.permute.xlu0 %831
        %833 = vrot.lane.b32.xlu0 %v776, 2
        %v834 = vpop.permute.xlu0 %833
        %835 = vrot.lane.b32.xlu0 %v777, 2
        %v836 = vpop.permute.xlu0 %835
        %837 = vrot.lane.b32.xlu0 %v778, 2
        %v838 = vpop.permute.xlu0 %837
        %839 = vrot.lane.b32.xlu0 %v779, 2
        %v840 = vpop.permute.xlu0 %839
        %841 = vrot.lane.b32.xlu0 %v780, 2
        %v842 = vpop.permute.xlu0 %841
        %843 = vrot.lane.b32.xlu0 %v781, 2
        %v844 = vpop.permute.xlu0 %843
        %845 = vrot.lane.b32.xlu0 %v782, 2
        %v846 = vpop.permute.xlu0 %845
        %847 = vrot.lane.b32.xlu0 %v783, 2
        %v848 = vpop.permute.xlu0 %847
        %849 = vrot.lane.b32.xlu0 %v784, 2
        %v850 = vpop.permute.xlu0 %849
        %851 = vrot.lane.b32.xlu0 %v785, 2
        %v852 = vpop.permute.xlu0 %851
        %853 = vrot.lane.b32.xlu0 %v786, 2
        %v854 = vpop.permute.xlu0 %853
        %855 = vrot.lane.b32.xlu0 %v787, 2
        %v856 = vpop.permute.xlu0 %855
        %857 = vrot.lane.b32.xlu0 %v788, 2
        %v858 = vpop.permute.xlu0 %857
        %859 = vrot.lane.b32.xlu0 %v789, 2
        %v860 = vpop.permute.xlu0 %859
        %861 = vrot.lane.b32.xlu0 %v790, 2
        %v862 = vpop.permute.xlu0 %861
        %vm863 = vcmask 15360
        %v864 = vsel %vm863, %v816, %v818
        %v865 = vsel %vm863, %v820, %v822
        %v866 = vsel %vm863, %v824, %v826
        %v867 = vsel %vm863, %v828, %v830
        %v868 = vsel %vm863, %v832, %v834
        %v869 = vsel %vm863, %v836, %v838
        %v870 = vsel %vm863, %v840, %v842
        %v871 = vsel %vm863, %v844, %v846
        %v872 = vsel %vm863, %v848, %v850
        %v873 = vsel %vm863, %v852, %v854
        %v874 = vsel %vm863, %v856, %v858
        %v875 = vsel %vm863, %v860, %v862
        %v900 = vadd.f32 %v478, %v816
        %v901 = vadd.f32 %v479, %v864
        %v902 = vadd.f32 %v480, %v820
        %v903 = vadd.f32 %v481, %v865
        %v904 = vadd.f32 %v482, %v824
        %v905 = vadd.f32 %v483, %v866
        %v906 = vadd.f32 %v484, %v828
        %v907 = vadd.f32 %v485, %v867
        %v908 = vadd.f32 %v486, %v832
        %v909 = vadd.f32 %v487, %v868
        %v910 = vadd.f32 %v488, %v836
        %v911 = vadd.f32 %v489, %v869
        %v912 = vadd.f32 %v490, %v840
        %v913 = vadd.f32 %v491, %v870
        %v914 = vadd.f32 %v492, %v844
        %v915 = vadd.f32 %v493, %v871
        %v916 = vadd.f32 %v494, %v848
        %v917 = vadd.f32 %v495, %v872
        %v918 = vadd.f32 %v496, %v852
        %v919 = vadd.f32 %v497, %v873
        %v920 = vadd.f32 %v498, %v856
        %v921 = vadd.f32 %v499, %v874
        %v922 = vadd.f32 %v500, %v860
        %v923 = vadd.f32 %v501, %v875
        %v924 = vmul.f32 %v743, 0.006646033
        %v925 = vmul.f32 %v744, 0.006646033
        %v926 = vmul.f32 %v745, 0.006646033
        %v927 = vmul.f32 %v746, 0.006646033
        %v928 = vmul.f32 %v747, 0.006646033
        %v929 = vmul.f32 %v748, 0.006646033
        %v930 = vmul.f32 %v749, 0.006646033
        %v931 = vmul.f32 %v750, 0.006646033
        %v932 = vmul.f32 %v751, 0.006646033
        %v933 = vmul.f32 %v752, 0.006646033
        %v934 = vmul.f32 %v753, 0.006646033
        %v935 = vmul.f32 %v754, 0.006646033
        %v936 = vmul.f32 %v755, 0.006646033
        %v937 = vmul.f32 %v756, 0.006646033
        %v938 = vmul.f32 %v757, 0.006646033
        %v939 = vmul.f32 %v758, 0.006646033
        %v940 = vmul.f32 %v759, 0.006646033
        %v941 = vmul.f32 %v760, 0.006646033
        %v942 = vmul.f32 %v761, 0.006646033
        %v943 = vmul.f32 %v762, 0.006646033
        %v944 = vmul.f32 %v763, 0.006646033
        %v945 = vmul.f32 %v764, 0.006646033
        %v946 = vmul.f32 %v765, 0.006646033
        %v947 = vmul.f32 %v766, 0.006646033
        %972 = vrot.lane.b32.xlu0 %v924, 2
        %v973 = vpop.permute.xlu0 %972
        %974 = vrot.lane.b32.xlu0 %v925, 2
        %v975 = vpop.permute.xlu0 %974
        %976 = vrot.lane.b32.xlu0 %v926, 2
        %v977 = vpop.permute.xlu0 %976
        %978 = vrot.lane.b32.xlu0 %v927, 2
        %v979 = vpop.permute.xlu0 %978
        %980 = vrot.lane.b32.xlu0 %v928, 2
        %v981 = vpop.permute.xlu0 %980
        %982 = vrot.lane.b32.xlu0 %v929, 2
        %v983 = vpop.permute.xlu0 %982
        %984 = vrot.lane.b32.xlu0 %v930, 2
        %v985 = vpop.permute.xlu0 %984
        %986 = vrot.lane.b32.xlu0 %v931, 2
        %v987 = vpop.permute.xlu0 %986
        %988 = vrot.lane.b32.xlu0 %v932, 2
        %v989 = vpop.permute.xlu0 %988
        %990 = vrot.lane.b32.xlu0 %v933, 2
        %v991 = vpop.permute.xlu0 %990
        %992 = vrot.lane.b32.xlu0 %v934, 2
        %v993 = vpop.permute.xlu0 %992
        %994 = vrot.lane.b32.xlu0 %v935, 2
        %v995 = vpop.permute.xlu0 %994
        %996 = vrot.lane.b32.xlu0 %v936, 2
        %v997 = vpop.permute.xlu0 %996
        %998 = vrot.lane.b32.xlu0 %v937, 2
        %v999 = vpop.permute.xlu0 %998
        %1000 = vrot.lane.b32.xlu0 %v938, 2
        %v1001 = vpop.permute.xlu0 %1000
        %1002 = vrot.lane.b32.xlu0 %v939, 2
        %v1003 = vpop.permute.xlu0 %1002
        %1004 = vrot.lane.b32.xlu0 %v940, 2
        %v1005 = vpop.permute.xlu0 %1004
        %1006 = vrot.lane.b32.xlu0 %v941, 2
        %v1007 = vpop.permute.xlu0 %1006
        %1008 = vrot.lane.b32.xlu0 %v942, 2
        %v1009 = vpop.permute.xlu0 %1008
        %1010 = vrot.lane.b32.xlu0 %v943, 2
        %v1011 = vpop.permute.xlu0 %1010
        %1012 = vrot.lane.b32.xlu0 %v944, 2
        %v1013 = vpop.permute.xlu0 %1012
        %1014 = vrot.lane.b32.xlu0 %v945, 2
        %v1015 = vpop.permute.xlu0 %1014
        %1016 = vrot.lane.b32.xlu0 %v946, 2
        %v1017 = vpop.permute.xlu0 %1016
        %1018 = vrot.lane.b32.xlu0 %v947, 2
        %v1019 = vpop.permute.xlu0 %1018
        %v1020 = vsel %vm863, %v973, %v975
        %v1021 = vsel %vm863, %v977, %v979
        %v1022 = vsel %vm863, %v981, %v983
        %v1023 = vsel %vm863, %v985, %v987
        %v1024 = vsel %vm863, %v989, %v991
        %v1025 = vsel %vm863, %v993, %v995
        %v1026 = vsel %vm863, %v997, %v999
        %v1027 = vsel %vm863, %v1001, %v1003
        %v1028 = vsel %vm863, %v1005, %v1007
        %v1029 = vsel %vm863, %v1009, %v1011
        %v1030 = vsel %vm863, %v1013, %v1015
        %v1031 = vsel %vm863, %v1017, %v1019
        %v1056 = vadd.f32 %v634, %v973
        %v1057 = vadd.f32 %v635, %v1020
        %v1058 = vadd.f32 %v636, %v977
        %v1059 = vadd.f32 %v637, %v1021
        %v1060 = vadd.f32 %v638, %v981
        %v1061 = vadd.f32 %v639, %v1022
        %v1062 = vadd.f32 %v640, %v985
        %v1063 = vadd.f32 %v641, %v1023
        %v1064 = vadd.f32 %v642, %v989
        %v1065 = vadd.f32 %v643, %v1024
        %v1066 = vadd.f32 %v644, %v993
        %v1067 = vadd.f32 %v645, %v1025
        %v1068 = vadd.f32 %v646, %v997
        %v1069 = vadd.f32 %v647, %v1026
        %v1070 = vadd.f32 %v648, %v1001
        %v1071 = vadd.f32 %v649, %v1027
        %v1072 = vadd.f32 %v650, %v1005
        %v1073 = vadd.f32 %v651, %v1028
        %v1074 = vadd.f32 %v652, %v1009
        %v1075 = vadd.f32 %v653, %v1029
        %v1076 = vadd.f32 %v654, %v1013
        %v1077 = vadd.f32 %v655, %v1030
        %v1078 = vadd.f32 %v656, %v1017
        %v1079 = vadd.f32 %v657, %v1031
        %1080 = vrot.lane.b32.xlu0 %v140, 122
        %v1081 = vpop.permute.xlu0 %1080
        %1082 = vrot.lane.b32.xlu0 %v141, 122
        %v1083 = vpop.permute.xlu0 %1082
        %1084 = vrot.lane.b32.xlu0 %v142, 122
        %v1085 = vpop.permute.xlu0 %1084
        %1086 = vrot.lane.b32.xlu0 %v143, 122
        %v1087 = vpop.permute.xlu0 %1086
        %1088 = vrot.lane.b32.xlu0 %v144, 122
        %v1089 = vpop.permute.xlu0 %1088
        %1090 = vrot.lane.b32.xlu0 %v145, 122
        %v1091 = vpop.permute.xlu0 %1090
        %1092 = vrot.lane.b32.xlu0 %v146, 122
        %v1093 = vpop.permute.xlu0 %1092
        %1094 = vrot.lane.b32.xlu0 %v147, 122
        %v1095 = vpop.permute.xlu0 %1094
        %1096 = vrot.lane.b32.xlu0 %v148, 122
        %v1097 = vpop.permute.xlu0 %1096
        %1098 = vrot.lane.b32.xlu0 %v149, 122
        %v1099 = vpop.permute.xlu0 %1098
        %1100 = vrot.lane.b32.xlu0 %v150, 122
        %v1101 = vpop.permute.xlu0 %1100
        %1102 = vrot.lane.b32.xlu0 %v151, 122
        %v1103 = vpop.permute.xlu0 %1102
        %1104 = vrot.lane.b32.xlu0 %v152, 122
        %v1105 = vpop.permute.xlu0 %1104
        %1106 = vrot.lane.b32.xlu0 %v153, 122
        %v1107 = vpop.permute.xlu0 %1106
        %1108 = vrot.lane.b32.xlu0 %v154, 122
        %v1109 = vpop.permute.xlu0 %1108
        %1110 = vrot.lane.b32.xlu0 %v155, 122
        %v1111 = vpop.permute.xlu0 %1110
        %1112 = vrot.lane.b32.xlu0 %v156, 122
        %v1113 = vpop.permute.xlu0 %1112
        %1114 = vrot.lane.b32.xlu0 %v157, 122
        %v1115 = vpop.permute.xlu0 %1114
        %1116 = vrot.lane.b32.xlu0 %v158, 122
        %v1117 = vpop.permute.xlu0 %1116
        %1118 = vrot.lane.b32.xlu0 %v159, 122
        %v1119 = vpop.permute.xlu0 %1118
        %1120 = vrot.lane.b32.xlu0 %v160, 122
        %v1121 = vpop.permute.xlu0 %1120
        %1122 = vrot.lane.b32.xlu0 %v161, 122
        %v1123 = vpop.permute.xlu0 %1122
        %1124 = vrot.lane.b32.xlu0 %v162, 122
        %v1125 = vpop.permute.xlu0 %1124
        %1126 = vrot.lane.b32.xlu0 %v163, 122
        %v1127 = vpop.permute.xlu0 %1126
        %vm1128 = vcmask 998400
        %v1129 = vsel %vm1128, %v1081, %v1083
        %v1130 = vsel %vm1128, %v1085, %v1087
        %v1131 = vsel %vm1128, %v1089, %v1091
        %v1132 = vsel %vm1128, %v1093, %v1095
        %v1133 = vsel %vm1128, %v1097, %v1099
        %v1134 = vsel %vm1128, %v1101, %v1103
        %v1135 = vsel %vm1128, %v1105, %v1107
        %v1136 = vsel %vm1128, %v1109, %v1111
        %v1137 = vsel %vm1128, %v1113, %v1115
        %v1138 = vsel %vm1128, %v1117, %v1119
        %v1139 = vsel %vm1128, %v1121, %v1123
        %v1140 = vsel %vm1128, %v1125, %v1127
        %v1165 = vadd.f32 %v140, %v1129
        %v1166 = vadd.f32 %v141, %v1083
        %v1167 = vadd.f32 %v142, %v1130
        %v1168 = vadd.f32 %v143, %v1087
        %v1169 = vadd.f32 %v144, %v1131
        %v1170 = vadd.f32 %v145, %v1091
        %v1171 = vadd.f32 %v146, %v1132
        %v1172 = vadd.f32 %v147, %v1095
        %v1173 = vadd.f32 %v148, %v1133
        %v1174 = vadd.f32 %v149, %v1099
        %v1175 = vadd.f32 %v150, %v1134
        %v1176 = vadd.f32 %v151, %v1103
        %v1177 = vadd.f32 %v152, %v1135
        %v1178 = vadd.f32 %v153, %v1107
        %v1179 = vadd.f32 %v154, %v1136
        %v1180 = vadd.f32 %v155, %v1111
        %v1181 = vadd.f32 %v156, %v1137
        %v1182 = vadd.f32 %v157, %v1115
        %v1183 = vadd.f32 %v158, %v1138
        %v1184 = vadd.f32 %v159, %v1119
        %v1185 = vadd.f32 %v160, %v1139
        %v1186 = vadd.f32 %v161, %v1123
        %v1187 = vadd.f32 %v162, %v1140
        %v1188 = vadd.f32 %v163, %v1127
        %v1189 = vmul.f32 %v1165, 0.023817923
        %v1190 = vmul.f32 %v1166, 0.023817923
        %v1191 = vmul.f32 %v1167, 0.023817923
        %v1192 = vmul.f32 %v1168, 0.023817923
        %v1193 = vmul.f32 %v1169, 0.023817923
        %v1194 = vmul.f32 %v1170, 0.023817923
        %v1195 = vmul.f32 %v1171, 0.023817923
        %v1196 = vmul.f32 %v1172, 0.023817923
        %v1197 = vmul.f32 %v1173, 0.023817923
        %v1198 = vmul.f32 %v1174, 0.023817923
        %v1199 = vmul.f32 %v1175, 0.023817923
        %v1200 = vmul.f32 %v1176, 0.023817923
        %v1201 = vmul.f32 %v1177, 0.023817923
        %v1202 = vmul.f32 %v1178, 0.023817923
        %v1203 = vmul.f32 %v1179, 0.023817923
        %v1204 = vmul.f32 %v1180, 0.023817923
        %v1205 = vmul.f32 %v1181, 0.023817923
        %v1206 = vmul.f32 %v1182, 0.023817923
        %v1207 = vmul.f32 %v1183, 0.023817923
        %v1208 = vmul.f32 %v1184, 0.023817923
        %v1209 = vmul.f32 %v1185, 0.023817923
        %v1210 = vmul.f32 %v1186, 0.023817923
        %v1211 = vmul.f32 %v1187, 0.023817923
        %v1212 = vmul.f32 %v1188, 0.023817923
        %1237 = vrot.lane.b32.xlu0 %v1189, 3
        %v1238 = vpop.permute.xlu0 %1237
        %1239 = vrot.lane.b32.xlu0 %v1190, 3
        %v1240 = vpop.permute.xlu0 %1239
        %1241 = vrot.lane.b32.xlu0 %v1191, 3
        %v1242 = vpop.permute.xlu0 %1241
        %1243 = vrot.lane.b32.xlu0 %v1192, 3
        %v1244 = vpop.permute.xlu0 %1243
        %1245 = vrot.lane.b32.xlu0 %v1193, 3
        %v1246 = vpop.permute.xlu0 %1245
        %1247 = vrot.lane.b32.xlu0 %v1194, 3
        %v1248 = vpop.permute.xlu0 %1247
        %1249 = vrot.lane.b32.xlu0 %v1195, 3
        %v1250 = vpop.permute.xlu0 %1249
        %1251 = vrot.lane.b32.xlu0 %v1196, 3
        %v1252 = vpop.permute.xlu0 %1251
        %1253 = vrot.lane.b32.xlu0 %v1197, 3
        %v1254 = vpop.permute.xlu0 %1253
        %1255 = vrot.lane.b32.xlu0 %v1198, 3
        %v1256 = vpop.permute.xlu0 %1255
        %1257 = vrot.lane.b32.xlu0 %v1199, 3
        %v1258 = vpop.permute.xlu0 %1257
        %1259 = vrot.lane.b32.xlu0 %v1200, 3
        %v1260 = vpop.permute.xlu0 %1259
        %1261 = vrot.lane.b32.xlu0 %v1201, 3
        %v1262 = vpop.permute.xlu0 %1261
        %1263 = vrot.lane.b32.xlu0 %v1202, 3
        %v1264 = vpop.permute.xlu0 %1263
        %1265 = vrot.lane.b32.xlu0 %v1203, 3
        %v1266 = vpop.permute.xlu0 %1265
        %1267 = vrot.lane.b32.xlu0 %v1204, 3
        %v1268 = vpop.permute.xlu0 %1267
        %1269 = vrot.lane.b32.xlu0 %v1205, 3
        %v1270 = vpop.permute.xlu0 %1269
        %1271 = vrot.lane.b32.xlu0 %v1206, 3
        %v1272 = vpop.permute.xlu0 %1271
        %1273 = vrot.lane.b32.xlu0 %v1207, 3
        %v1274 = vpop.permute.xlu0 %1273
        %1275 = vrot.lane.b32.xlu0 %v1208, 3
        %v1276 = vpop.permute.xlu0 %1275
        %1277 = vrot.lane.b32.xlu0 %v1209, 3
        %v1278 = vpop.permute.xlu0 %1277
        %1279 = vrot.lane.b32.xlu0 %v1210, 3
        %v1280 = vpop.permute.xlu0 %1279
        %1281 = vrot.lane.b32.xlu0 %v1211, 3
        %v1282 = vpop.permute.xlu0 %1281
        %1283 = vrot.lane.b32.xlu0 %v1212, 3
        %v1284 = vpop.permute.xlu0 %1283
        %vm1285 = vcmask 23552
        %v1286 = vsel %vm1285, %v1238, %v1240
        %v1287 = vsel %vm1285, %v1242, %v1244
        %v1288 = vsel %vm1285, %v1246, %v1248
        %v1289 = vsel %vm1285, %v1250, %v1252
        %v1290 = vsel %vm1285, %v1254, %v1256
        %v1291 = vsel %vm1285, %v1258, %v1260
        %v1292 = vsel %vm1285, %v1262, %v1264
        %v1293 = vsel %vm1285, %v1266, %v1268
        %v1294 = vsel %vm1285, %v1270, %v1272
        %v1295 = vsel %vm1285, %v1274, %v1276
        %v1296 = vsel %vm1285, %v1278, %v1280
        %v1297 = vsel %vm1285, %v1282, %v1284
        %v1322 = vadd.f32 %v900, %v1238
        %v1323 = vadd.f32 %v901, %v1286
        %v1324 = vadd.f32 %v902, %v1242
        %v1325 = vadd.f32 %v903, %v1287
        %v1326 = vadd.f32 %v904, %v1246
        %v1327 = vadd.f32 %v905, %v1288
        %v1328 = vadd.f32 %v906, %v1250
        %v1329 = vadd.f32 %v907, %v1289
        %v1330 = vadd.f32 %v908, %v1254
        %v1331 = vadd.f32 %v909, %v1290
        %v1332 = vadd.f32 %v910, %v1258
        %v1333 = vadd.f32 %v911, %v1291
        %v1334 = vadd.f32 %v912, %v1262
        %v1335 = vadd.f32 %v913, %v1292
        %v1336 = vadd.f32 %v914, %v1266
        %v1337 = vadd.f32 %v915, %v1293
        %v1338 = vadd.f32 %v916, %v1270
        %v1339 = vadd.f32 %v917, %v1294
        %v1340 = vadd.f32 %v918, %v1274
        %v1341 = vadd.f32 %v919, %v1295
        %v1342 = vadd.f32 %v920, %v1278
        %v1343 = vadd.f32 %v921, %v1296
        %v1344 = vadd.f32 %v922, %v1282
        %v1345 = vadd.f32 %v923, %v1297
        %1346 = vrot.lane.b32.xlu0 %v140, 120
        %v1347 = vpop.permute.xlu0 %1346
        %1348 = vrot.lane.b32.xlu0 %v141, 120
        %v1349 = vpop.permute.xlu0 %1348
        %1350 = vrot.lane.b32.xlu0 %v142, 120
        %v1351 = vpop.permute.xlu0 %1350
        %1352 = vrot.lane.b32.xlu0 %v143, 120
        %v1353 = vpop.permute.xlu0 %1352
        %1354 = vrot.lane.b32.xlu0 %v144, 120
        %v1355 = vpop.permute.xlu0 %1354
        %1356 = vrot.lane.b32.xlu0 %v145, 120
        %v1357 = vpop.permute.xlu0 %1356
        %1358 = vrot.lane.b32.xlu0 %v146, 120
        %v1359 = vpop.permute.xlu0 %1358
        %1360 = vrot.lane.b32.xlu0 %v147, 120
        %v1361 = vpop.permute.xlu0 %1360
        %1362 = vrot.lane.b32.xlu0 %v148, 120
        %v1363 = vpop.permute.xlu0 %1362
        %1364 = vrot.lane.b32.xlu0 %v149, 120
        %v1365 = vpop.permute.xlu0 %1364
        %1366 = vrot.lane.b32.xlu0 %v150, 120
        %v1367 = vpop.permute.xlu0 %1366
        %1368 = vrot.lane.b32.xlu0 %v151, 120
        %v1369 = vpop.permute.xlu0 %1368
        %1370 = vrot.lane.b32.xlu0 %v152, 120
        %v1371 = vpop.permute.xlu0 %1370
        %1372 = vrot.lane.b32.xlu0 %v153, 120
        %v1373 = vpop.permute.xlu0 %1372
        %1374 = vrot.lane.b32.xlu0 %v154, 120
        %v1375 = vpop.permute.xlu0 %1374
        %1376 = vrot.lane.b32.xlu0 %v155, 120
        %v1377 = vpop.permute.xlu0 %1376
        %1378 = vrot.lane.b32.xlu0 %v156, 120
        %v1379 = vpop.permute.xlu0 %1378
        %1380 = vrot.lane.b32.xlu0 %v157, 120
        %v1381 = vpop.permute.xlu0 %1380
        %1382 = vrot.lane.b32.xlu0 %v158, 120
        %v1383 = vpop.permute.xlu0 %1382
        %1384 = vrot.lane.b32.xlu0 %v159, 120
        %v1385 = vpop.permute.xlu0 %1384
        %1386 = vrot.lane.b32.xlu0 %v160, 120
        %v1387 = vpop.permute.xlu0 %1386
        %1388 = vrot.lane.b32.xlu0 %v161, 120
        %v1389 = vpop.permute.xlu0 %1388
        %1390 = vrot.lane.b32.xlu0 %v162, 120
        %v1391 = vpop.permute.xlu0 %1390
        %1392 = vrot.lane.b32.xlu0 %v163, 120
        %v1393 = vpop.permute.xlu0 %1392
        %vm1394 = vcmask 982016
        %v1395 = vsel %vm1394, %v1347, %v1349
        %v1396 = vsel %vm1394, %v1351, %v1353
        %v1397 = vsel %vm1394, %v1355, %v1357
        %v1398 = vsel %vm1394, %v1359, %v1361
        %v1399 = vsel %vm1394, %v1363, %v1365
        %v1400 = vsel %vm1394, %v1367, %v1369
        %v1401 = vsel %vm1394, %v1371, %v1373
        %v1402 = vsel %vm1394, %v1375, %v1377
        %v1403 = vsel %vm1394, %v1379, %v1381
        %v1404 = vsel %vm1394, %v1383, %v1385
        %v1405 = vsel %vm1394, %v1387, %v1389
        %v1406 = vsel %vm1394, %v1391, %v1393
        %v1419 = vadd.f32 %v140, %v1395
        %v1420 = vadd.f32 %v142, %v1396
        %v1421 = vadd.f32 %v144, %v1397
        %v1422 = vadd.f32 %v146, %v1398
        %v1423 = vadd.f32 %v148, %v1399
        %v1424 = vadd.f32 %v150, %v1400
        %v1425 = vadd.f32 %v152, %v1401
        %v1426 = vadd.f32 %v154, %v1402
        %v1427 = vadd.f32 %v156, %v1403
        %v1428 = vadd.f32 %v158, %v1404
        %v1429 = vadd.f32 %v160, %v1405
        %v1430 = vadd.f32 %v162, %v1406
        %v1431 = vmul.f32 %v1419, 0.003325727
        %v1432 = vmul.f32 %v1420, 0.003325727
        %v1433 = vmul.f32 %v1421, 0.003325727
        %v1434 = vmul.f32 %v1422, 0.003325727
        %v1435 = vmul.f32 %v1423, 0.003325727
        %v1436 = vmul.f32 %v1424, 0.003325727
        %v1437 = vmul.f32 %v1425, 0.003325727
        %v1438 = vmul.f32 %v1426, 0.003325727
        %v1439 = vmul.f32 %v1427, 0.003325727
        %v1440 = vmul.f32 %v1428, 0.003325727
        %v1441 = vmul.f32 %v1429, 0.003325727
        %v1442 = vmul.f32 %v1430, 0.003325727
        %1455 = vrot.lane.b32.xlu0 %v1431, 4
        %v1456 = vpop.permute.xlu0 %1455
        %1457 = vrot.lane.b32.xlu0 %v1432, 4
        %v1458 = vpop.permute.xlu0 %1457
        %1459 = vrot.lane.b32.xlu0 %v1433, 4
        %v1460 = vpop.permute.xlu0 %1459
        %1461 = vrot.lane.b32.xlu0 %v1434, 4
        %v1462 = vpop.permute.xlu0 %1461
        %1463 = vrot.lane.b32.xlu0 %v1435, 4
        %v1464 = vpop.permute.xlu0 %1463
        %1465 = vrot.lane.b32.xlu0 %v1436, 4
        %v1466 = vpop.permute.xlu0 %1465
        %1467 = vrot.lane.b32.xlu0 %v1437, 4
        %v1468 = vpop.permute.xlu0 %1467
        %1469 = vrot.lane.b32.xlu0 %v1438, 4
        %v1470 = vpop.permute.xlu0 %1469
        %1471 = vrot.lane.b32.xlu0 %v1439, 4
        %v1472 = vpop.permute.xlu0 %1471
        %1473 = vrot.lane.b32.xlu0 %v1440, 4
        %v1474 = vpop.permute.xlu0 %1473
        %1475 = vrot.lane.b32.xlu0 %v1441, 4
        %v1476 = vpop.permute.xlu0 %1475
        %1477 = vrot.lane.b32.xlu0 %v1442, 4
        %v1478 = vpop.permute.xlu0 %1477
        %v1491 = vadd.f32 %v1322, %v1456
        %v1492 = vadd.f32 %v1323, %v1456
        %v1493 = vadd.f32 %v1324, %v1458
        %v1494 = vadd.f32 %v1325, %v1458
        %v1495 = vadd.f32 %v1326, %v1460
        %v1496 = vadd.f32 %v1327, %v1460
        %v1497 = vadd.f32 %v1328, %v1462
        %v1498 = vadd.f32 %v1329, %v1462
        %v1499 = vadd.f32 %v1330, %v1464
        %v1500 = vadd.f32 %v1331, %v1464
        %v1501 = vadd.f32 %v1332, %v1466
        %v1502 = vadd.f32 %v1333, %v1466
        %v1503 = vadd.f32 %v1334, %v1468
        %v1504 = vadd.f32 %v1335, %v1468
        %v1505 = vadd.f32 %v1336, %v1470
        %v1506 = vadd.f32 %v1337, %v1470
        %v1507 = vadd.f32 %v1338, %v1472
        %v1508 = vadd.f32 %v1339, %v1472
        %v1509 = vadd.f32 %v1340, %v1474
        %v1510 = vadd.f32 %v1341, %v1474
        %v1511 = vadd.f32 %v1342, %v1476
        %v1512 = vadd.f32 %v1343, %v1476
        %v1513 = vadd.f32 %v1344, %v1478
        %v1514 = vadd.f32 %v1345, %v1478
        %v1515 = vmul.f32 %v1056, 0.5982568
        %v1516 = vmul.f32 %v1057, 0.5982568
        %v1517 = vmul.f32 %v1058, 0.5982568
        %v1518 = vmul.f32 %v1059, 0.5982568
        %v1519 = vmul.f32 %v1060, 0.5982568
        %v1520 = vmul.f32 %v1061, 0.5982568
        %v1521 = vmul.f32 %v1062, 0.5982568
        %v1522 = vmul.f32 %v1063, 0.5982568
        %v1523 = vmul.f32 %v1064, 0.5982568
        %v1524 = vmul.f32 %v1065, 0.5982568
        %v1525 = vmul.f32 %v1066, 0.5982568
        %v1526 = vmul.f32 %v1067, 0.5982568
        %v1527 = vmul.f32 %v1068, 0.5982568
        %v1528 = vmul.f32 %v1069, 0.5982568
        %v1529 = vmul.f32 %v1070, 0.5982568
        %v1530 = vmul.f32 %v1071, 0.5982568
        %v1531 = vmul.f32 %v1072, 0.5982568
        %v1532 = vmul.f32 %v1073, 0.5982568
        %v1533 = vmul.f32 %v1074, 0.5982568
        %v1534 = vmul.f32 %v1075, 0.5982568
        %v1535 = vmul.f32 %v1076, 0.5982568
        %v1536 = vmul.f32 %v1077, 0.5982568
        %v1537 = vmul.f32 %v1078, 0.5982568
        %v1538 = vmul.f32 %v1079, 0.5982568
        %v1539 = vmul.f32 %v1491, 0.2993724
        %v1540 = vmul.f32 %v1492, 0.2993724
        %v1541 = vmul.f32 %v1493, 0.2993724
        %v1542 = vmul.f32 %v1494, 0.2993724
        %v1543 = vmul.f32 %v1495, 0.2993724
        %v1544 = vmul.f32 %v1496, 0.2993724
        %v1545 = vmul.f32 %v1497, 0.2993724
        %v1546 = vmul.f32 %v1498, 0.2993724
        %v1547 = vmul.f32 %v1499, 0.2993724
        %v1548 = vmul.f32 %v1500, 0.2993724
        %v1549 = vmul.f32 %v1501, 0.2993724
        %v1550 = vmul.f32 %v1502, 0.2993724
        %v1551 = vmul.f32 %v1503, 0.2993724
        %v1552 = vmul.f32 %v1504, 0.2993724
        %v1553 = vmul.f32 %v1505, 0.2993724
        %v1554 = vmul.f32 %v1506, 0.2993724
        %v1555 = vmul.f32 %v1507, 0.2993724
        %v1556 = vmul.f32 %v1508, 0.2993724
        %v1557 = vmul.f32 %v1509, 0.2993724
        %v1558 = vmul.f32 %v1510, 0.2993724
        %v1559 = vmul.f32 %v1511, 0.2993724
        %v1560 = vmul.f32 %v1512, 0.2993724
        %v1561 = vmul.f32 %v1513, 0.2993724
        %v1562 = vmul.f32 %v1514, 0.2993724
        %v1563 = vsub.f32 %v1515, %v1539
        %v1564 = vsub.f32 %v1516, %v1540
        %v1565 = vsub.f32 %v1517, %v1541
        %v1566 = vsub.f32 %v1518, %v1542
        %v1567 = vsub.f32 %v1519, %v1543
        %v1568 = vsub.f32 %v1520, %v1544
        %v1569 = vsub.f32 %v1521, %v1545
        %v1570 = vsub.f32 %v1522, %v1546
        %v1571 = vsub.f32 %v1523, %v1547
        %v1572 = vsub.f32 %v1524, %v1548
        %v1573 = vsub.f32 %v1525, %v1549
        %v1574 = vsub.f32 %v1526, %v1550
        %v1575 = vsub.f32 %v1527, %v1551
        %v1576 = vsub.f32 %v1528, %v1552
        %v1577 = vsub.f32 %v1529, %v1553
        %v1578 = vsub.f32 %v1530, %v1554
        %v1579 = vsub.f32 %v1531, %v1555
        %v1580 = vsub.f32 %v1532, %v1556
        %v1581 = vsub.f32 %v1533, %v1557
        %v1582 = vsub.f32 %v1534, %v1558
        %v1583 = vsub.f32 %v1535, %v1559
        %v1584 = vsub.f32 %v1536, %v1560
        %v1585 = vsub.f32 %v1537, %v1561
        %v1586 = vsub.f32 %v1538, %v1562
        %vm1611 = vcmask 1045504
        %v1612 = vrot.slane %v1056, 2
        %v1613 = vrot.slane %v1058, 2
        %v1614 = vsel %vm1611, %v1612, %v1613
        %v1615 = vrot.slane %v1057, 2
        %v1616 = vrot.slane %v1059, 2
        %v1617 = vsel %vm1611, %v1615, %v1616
        %v1618 = vrot.slane %v1060, 2
        %v1619 = vsel %vm1611, %v1613, %v1618
        %v1620 = vrot.slane %v1061, 2
        %v1621 = vsel %vm1611, %v1616, %v1620
        %v1622 = vrot.slane %v1062, 2
        %v1623 = vrot.slane %v1064, 2
        %v1624 = vsel %vm1611, %v1622, %v1623
        %v1625 = vrot.slane %v1063, 2
        %v1626 = vrot.slane %v1065, 2
        %v1627 = vsel %vm1611, %v1625, %v1626
        %v1628 = vrot.slane %v1066, 2
        %v1629 = vsel %vm1611, %v1623, %v1628
        %v1630 = vrot.slane %v1067, 2
        %v1631 = vsel %vm1611, %v1626, %v1630
        %v1632 = vrot.slane %v1068, 2
        %v1633 = vrot.slane %v1070, 2
        %v1634 = vsel %vm1611, %v1632, %v1633
        %v1635 = vrot.slane %v1069, 2
        %v1636 = vrot.slane %v1071, 2
        %v1637 = vsel %vm1611, %v1635, %v1636
        %v1638 = vrot.slane %v1072, 2
        %v1639 = vsel %vm1611, %v1633, %v1638
        %v1640 = vrot.slane %v1073, 2
        %v1641 = vsel %vm1611, %v1636, %v1640
        %v1642 = vrot.slane %v1074, 2
        %v1643 = vrot.slane %v1076, 2
        %v1644 = vsel %vm1611, %v1642, %v1643
        %v1645 = vrot.slane %v1075, 2
        %v1646 = vrot.slane %v1077, 2
        %v1647 = vsel %vm1611, %v1645, %v1646
        %v1648 = vrot.slane %v1078, 2
        %v1649 = vsel %vm1611, %v1643, %v1648
        %v1650 = vrot.slane %v1079, 2
        %v1651 = vsel %vm1611, %v1646, %v1650
        %v1676 = vadd.f32 %v1056, %v1614
        %v1677 = vadd.f32 %v1057, %v1617
        %v1678 = vadd.f32 %v1058, %v1619
        %v1679 = vadd.f32 %v1059, %v1621
        %v1680 = vadd.f32 %v1060, %v1618
        %v1681 = vadd.f32 %v1061, %v1620
        %v1682 = vadd.f32 %v1062, %v1624
        %v1683 = vadd.f32 %v1063, %v1627
        %v1684 = vadd.f32 %v1064, %v1629
        %v1685 = vadd.f32 %v1065, %v1631
        %v1686 = vadd.f32 %v1066, %v1628
        %v1687 = vadd.f32 %v1067, %v1630
        %v1688 = vadd.f32 %v1068, %v1634
        %v1689 = vadd.f32 %v1069, %v1637
        %v1690 = vadd.f32 %v1070, %v1639
        %v1691 = vadd.f32 %v1071, %v1641
        %v1692 = vadd.f32 %v1072, %v1638
        %v1693 = vadd.f32 %v1073, %v1640
        %v1694 = vadd.f32 %v1074, %v1644
        %v1695 = vadd.f32 %v1075, %v1647
        %v1696 = vadd.f32 %v1076, %v1649
        %v1697 = vadd.f32 %v1077, %v1651
        %v1698 = vadd.f32 %v1078, %v1648
        %v1699 = vadd.f32 %v1079, %v1650
        %v1700 = vmul.f32 %v1676, 0.19422555
        %v1701 = vmul.f32 %v1677, 0.19422555
        %v1702 = vmul.f32 %v1678, 0.19422555
        %v1703 = vmul.f32 %v1679, 0.19422555
        %v1704 = vmul.f32 %v1680, 0.19422555
        %v1705 = vmul.f32 %v1681, 0.19422555
        %v1706 = vmul.f32 %v1682, 0.19422555
        %v1707 = vmul.f32 %v1683, 0.19422555
        %v1708 = vmul.f32 %v1684, 0.19422555
        %v1709 = vmul.f32 %v1685, 0.19422555
        %v1710 = vmul.f32 %v1686, 0.19422555
        %v1711 = vmul.f32 %v1687, 0.19422555
        %v1712 = vmul.f32 %v1688, 0.19422555
        %v1713 = vmul.f32 %v1689, 0.19422555
        %v1714 = vmul.f32 %v1690, 0.19422555
        %v1715 = vmul.f32 %v1691, 0.19422555
        %v1716 = vmul.f32 %v1692, 0.19422555
        %v1717 = vmul.f32 %v1693, 0.19422555
        %v1718 = vmul.f32 %v1694, 0.19422555
        %v1719 = vmul.f32 %v1695, 0.19422555
        %v1720 = vmul.f32 %v1696, 0.19422555
        %v1721 = vmul.f32 %v1697, 0.19422555
        %v1722 = vmul.f32 %v1698, 0.19422555
        %v1723 = vmul.f32 %v1699, 0.19422555
        %vm1748 = vcmask 1040384
        %v1749 = vrot.slane %v1700, 7
        %v1750 = vrot.slane %v1701, 7
        %v1751 = vrot.slane %v1702, 7
        %v1752 = vsel %vm1748, %v1749, %v1751
        %v1753 = vrot.slane %v1703, 7
        %v1754 = vsel %vm1748, %v1750, %v1753
        %v1755 = vrot.slane %v1704, 7
        %v1756 = vsel %vm1748, %v1751, %v1755
        %v1757 = vrot.slane %v1705, 7
        %v1758 = vsel %vm1748, %v1753, %v1757
        %v1759 = vrot.slane %v1706, 7
        %v1760 = vrot.slane %v1707, 7
        %v1761 = vrot.slane %v1708, 7
        %v1762 = vsel %vm1748, %v1759, %v1761
        %v1763 = vrot.slane %v1709, 7
        %v1764 = vsel %vm1748, %v1760, %v1763
        %v1765 = vrot.slane %v1710, 7
        %v1766 = vsel %vm1748, %v1761, %v1765
        %v1767 = vrot.slane %v1711, 7
        %v1768 = vsel %vm1748, %v1763, %v1767
        %v1769 = vrot.slane %v1712, 7
        %v1770 = vrot.slane %v1713, 7
        %v1771 = vrot.slane %v1714, 7
        %v1772 = vsel %vm1748, %v1769, %v1771
        %v1773 = vrot.slane %v1715, 7
        %v1774 = vsel %vm1748, %v1770, %v1773
        %v1775 = vrot.slane %v1716, 7
        %v1776 = vsel %vm1748, %v1771, %v1775
        %v1777 = vrot.slane %v1717, 7
        %v1778 = vsel %vm1748, %v1773, %v1777
        %v1779 = vrot.slane %v1718, 7
        %v1780 = vrot.slane %v1719, 7
        %v1781 = vrot.slane %v1720, 7
        %v1782 = vsel %vm1748, %v1779, %v1781
        %v1783 = vrot.slane %v1721, 7
        %v1784 = vsel %vm1748, %v1780, %v1783
        %v1785 = vrot.slane %v1722, 7
        %v1786 = vsel %vm1748, %v1781, %v1785
        %v1787 = vrot.slane %v1723, 7
        %v1788 = vsel %vm1748, %v1783, %v1787
        %v1813 = vadd.f32 %v1563, %v1749
        %v1814 = vadd.f32 %v1564, %v1750
        %v1815 = vadd.f32 %v1565, %v1752
        %v1816 = vadd.f32 %v1566, %v1754
        %v1817 = vadd.f32 %v1567, %v1756
        %v1818 = vadd.f32 %v1568, %v1758
        %v1819 = vadd.f32 %v1569, %v1759
        %v1820 = vadd.f32 %v1570, %v1760
        %v1821 = vadd.f32 %v1571, %v1762
        %v1822 = vadd.f32 %v1572, %v1764
        %v1823 = vadd.f32 %v1573, %v1766
        %v1824 = vadd.f32 %v1574, %v1768
        %v1825 = vadd.f32 %v1575, %v1769
        %v1826 = vadd.f32 %v1576, %v1770
        %v1827 = vadd.f32 %v1577, %v1772
        %v1828 = vadd.f32 %v1578, %v1774
        %v1829 = vadd.f32 %v1579, %v1776
        %v1830 = vadd.f32 %v1580, %v1778
        %v1831 = vadd.f32 %v1581, %v1779
        %v1832 = vadd.f32 %v1582, %v1780
        %v1833 = vadd.f32 %v1583, %v1782
        %v1834 = vadd.f32 %v1584, %v1784
        %v1835 = vadd.f32 %v1585, %v1786
        %v1836 = vadd.f32 %v1586, %v1788
        %v1861 = vrot.slane %v1491, 2
        %v1862 = vrot.slane %v1493, 2
        %v1863 = vsel %vm1611, %v1861, %v1862
        %v1864 = vrot.slane %v1492, 2
        %v1865 = vrot.slane %v1494, 2
        %v1866 = vsel %vm1611, %v1864, %v1865
        %v1867 = vrot.slane %v1495, 2
        %v1868 = vsel %vm1611, %v1862, %v1867
        %v1869 = vrot.slane %v1496, 2
        %v1870 = vsel %vm1611, %v1865, %v1869
        %v1871 = vrot.slane %v1497, 2
        %v1872 = vrot.slane %v1499, 2
        %v1873 = vsel %vm1611, %v1871, %v1872
        %v1874 = vrot.slane %v1498, 2
        %v1875 = vrot.slane %v1500, 2
        %v1876 = vsel %vm1611, %v1874, %v1875
        %v1877 = vrot.slane %v1501, 2
        %v1878 = vsel %vm1611, %v1872, %v1877
        %v1879 = vrot.slane %v1502, 2
        %v1880 = vsel %vm1611, %v1875, %v1879
        %v1881 = vrot.slane %v1503, 2
        %v1882 = vrot.slane %v1505, 2
        %v1883 = vsel %vm1611, %v1881, %v1882
        %v1884 = vrot.slane %v1504, 2
        %v1885 = vrot.slane %v1506, 2
        %v1886 = vsel %vm1611, %v1884, %v1885
        %v1887 = vrot.slane %v1507, 2
        %v1888 = vsel %vm1611, %v1882, %v1887
        %v1889 = vrot.slane %v1508, 2
        %v1890 = vsel %vm1611, %v1885, %v1889
        %v1891 = vrot.slane %v1509, 2
        %v1892 = vrot.slane %v1511, 2
        %v1893 = vsel %vm1611, %v1891, %v1892
        %v1894 = vrot.slane %v1510, 2
        %v1895 = vrot.slane %v1512, 2
        %v1896 = vsel %vm1611, %v1894, %v1895
        %v1897 = vrot.slane %v1513, 2
        %v1898 = vsel %vm1611, %v1892, %v1897
        %v1899 = vrot.slane %v1514, 2
        %v1900 = vsel %vm1611, %v1895, %v1899
        %v1925 = vadd.f32 %v1491, %v1863
        %v1926 = vadd.f32 %v1492, %v1866
        %v1927 = vadd.f32 %v1493, %v1868
        %v1928 = vadd.f32 %v1494, %v1870
        %v1929 = vadd.f32 %v1495, %v1867
        %v1930 = vadd.f32 %v1496, %v1869
        %v1931 = vadd.f32 %v1497, %v1873
        %v1932 = vadd.f32 %v1498, %v1876
        %v1933 = vadd.f32 %v1499, %v1878
        %v1934 = vadd.f32 %v1500, %v1880
        %v1935 = vadd.f32 %v1501, %v1877
        %v1936 = vadd.f32 %v1502, %v1879
        %v1937 = vadd.f32 %v1503, %v1883
        %v1938 = vadd.f32 %v1504, %v1886
        %v1939 = vadd.f32 %v1505, %v1888
        %v1940 = vadd.f32 %v1506, %v1890
        %v1941 = vadd.f32 %v1507, %v1887
        %v1942 = vadd.f32 %v1508, %v1889
        %v1943 = vadd.f32 %v1509, %v1893
        %v1944 = vadd.f32 %v1510, %v1896
        %v1945 = vadd.f32 %v1511, %v1898
        %v1946 = vadd.f32 %v1512, %v1900
        %v1947 = vadd.f32 %v1513, %v1897
        %v1948 = vadd.f32 %v1514, %v1899
        %v1949 = vmul.f32 %v1925, 0.22597815
        %v1950 = vmul.f32 %v1926, 0.22597815
        %v1951 = vmul.f32 %v1927, 0.22597815
        %v1952 = vmul.f32 %v1928, 0.22597815
        %v1953 = vmul.f32 %v1929, 0.22597815
        %v1954 = vmul.f32 %v1930, 0.22597815
        %v1955 = vmul.f32 %v1931, 0.22597815
        %v1956 = vmul.f32 %v1932, 0.22597815
        %v1957 = vmul.f32 %v1933, 0.22597815
        %v1958 = vmul.f32 %v1934, 0.22597815
        %v1959 = vmul.f32 %v1935, 0.22597815
        %v1960 = vmul.f32 %v1936, 0.22597815
        %v1961 = vmul.f32 %v1937, 0.22597815
        %v1962 = vmul.f32 %v1938, 0.22597815
        %v1963 = vmul.f32 %v1939, 0.22597815
        %v1964 = vmul.f32 %v1940, 0.22597815
        %v1965 = vmul.f32 %v1941, 0.22597815
        %v1966 = vmul.f32 %v1942, 0.22597815
        %v1967 = vmul.f32 %v1943, 0.22597815
        %v1968 = vmul.f32 %v1944, 0.22597815
        %v1969 = vmul.f32 %v1945, 0.22597815
        %v1970 = vmul.f32 %v1946, 0.22597815
        %v1971 = vmul.f32 %v1947, 0.22597815
        %v1972 = vmul.f32 %v1948, 0.22597815
        %v1997 = vrot.slane %v1949, 7
        %v1998 = vrot.slane %v1950, 7
        %v1999 = vrot.slane %v1951, 7
        %v2000 = vsel %vm1748, %v1997, %v1999
        %v2001 = vrot.slane %v1952, 7
        %v2002 = vsel %vm1748, %v1998, %v2001
        %v2003 = vrot.slane %v1953, 7
        %v2004 = vsel %vm1748, %v1999, %v2003
        %v2005 = vrot.slane %v1954, 7
        %v2006 = vsel %vm1748, %v2001, %v2005
        %v2007 = vrot.slane %v1955, 7
        %v2008 = vrot.slane %v1956, 7
        %v2009 = vrot.slane %v1957, 7
        %v2010 = vsel %vm1748, %v2007, %v2009
        %v2011 = vrot.slane %v1958, 7
        %v2012 = vsel %vm1748, %v2008, %v2011
        %v2013 = vrot.slane %v1959, 7
        %v2014 = vsel %vm1748, %v2009, %v2013
        %v2015 = vrot.slane %v1960, 7
        %v2016 = vsel %vm1748, %v2011, %v2015
        %v2017 = vrot.slane %v1961, 7
        %v2018 = vrot.slane %v1962, 7
        %v2019 = vrot.slane %v1963, 7
        %v2020 = vsel %vm1748, %v2017, %v2019
        %v2021 = vrot.slane %v1964, 7
        %v2022 = vsel %vm1748, %v2018, %v2021
        %v2023 = vrot.slane %v1965, 7
        %v2024 = vsel %vm1748, %v2019, %v2023
        %v2025 = vrot.slane %v1966, 7
        %v2026 = vsel %vm1748, %v2021, %v2025
        %v2027 = vrot.slane %v1967, 7
        %v2028 = vrot.slane %v1968, 7
        %v2029 = vrot.slane %v1969, 7
        %v2030 = vsel %vm1748, %v2027, %v2029
        %v2031 = vrot.slane %v1970, 7
        %v2032 = vsel %vm1748, %v2028, %v2031
        %v2033 = vrot.slane %v1971, 7
        %v2034 = vsel %vm1748, %v2029, %v2033
        %v2035 = vrot.slane %v1972, 7
        %v2036 = vsel %vm1748, %v2031, %v2035
        %v2061 = vsub.f32 %v1813, %v1997
        %v2062 = vsub.f32 %v1814, %v1998
        %v2063 = vsub.f32 %v1815, %v2000
        %v2064 = vsub.f32 %v1816, %v2002
        %v2065 = vsub.f32 %v1817, %v2004
        %v2066 = vsub.f32 %v1818, %v2006
        %v2067 = vsub.f32 %v1819, %v2007
        %v2068 = vsub.f32 %v1820, %v2008
        %v2069 = vsub.f32 %v1821, %v2010
        %v2070 = vsub.f32 %v1822, %v2012
        %v2071 = vsub.f32 %v1823, %v2014
        %v2072 = vsub.f32 %v1824, %v2016
        %v2073 = vsub.f32 %v1825, %v2017
        %v2074 = vsub.f32 %v1826, %v2018
        %v2075 = vsub.f32 %v1827, %v2020
        %v2076 = vsub.f32 %v1828, %v2022
        %v2077 = vsub.f32 %v1829, %v2024
        %v2078 = vsub.f32 %v1830, %v2026
        %v2079 = vsub.f32 %v1831, %v2027
        %v2080 = vsub.f32 %v1832, %v2028
        %v2081 = vsub.f32 %v1833, %v2030
        %v2082 = vsub.f32 %v1834, %v2032
        %v2083 = vsub.f32 %v1835, %v2034
        %v2084 = vsub.f32 %v1836, %v2036
        %vm2085 = vcmask 1043456
        %v2086 = vrot.slane %v1056, 4
        %v2087 = vrot.slane %v1058, 4
        %v2088 = vsel %vm2085, %v2086, %v2087
        %v2089 = vrot.slane %v1057, 4
        %v2090 = vrot.slane %v1059, 4
        %v2091 = vsel %vm2085, %v2089, %v2090
        %v2092 = vrot.slane %v1060, 4
        %v2093 = vsel %vm2085, %v2087, %v2092
        %v2094 = vrot.slane %v1061, 4
        %v2095 = vsel %vm2085, %v2090, %v2094
        %v2096 = vrot.slane %v1062, 4
        %v2097 = vrot.slane %v1064, 4
        %v2098 = vsel %vm2085, %v2096, %v2097
        %v2099 = vrot.slane %v1063, 4
        %v2100 = vrot.slane %v1065, 4
        %v2101 = vsel %vm2085, %v2099, %v2100
        %v2102 = vrot.slane %v1066, 4
        %v2103 = vsel %vm2085, %v2097, %v2102
        %v2104 = vrot.slane %v1067, 4
        %v2105 = vsel %vm2085, %v2100, %v2104
        %v2106 = vrot.slane %v1068, 4
        %v2107 = vrot.slane %v1070, 4
        %v2108 = vsel %vm2085, %v2106, %v2107
        %v2109 = vrot.slane %v1069, 4
        %v2110 = vrot.slane %v1071, 4
        %v2111 = vsel %vm2085, %v2109, %v2110
        %v2112 = vrot.slane %v1072, 4
        %v2113 = vsel %vm2085, %v2107, %v2112
        %v2114 = vrot.slane %v1073, 4
        %v2115 = vsel %vm2085, %v2110, %v2114
        %v2116 = vrot.slane %v1074, 4
        %v2117 = vrot.slane %v1076, 4
        %v2118 = vsel %vm2085, %v2116, %v2117
        %v2119 = vrot.slane %v1075, 4
        %v2120 = vrot.slane %v1077, 4
        %v2121 = vsel %vm2085, %v2119, %v2120
        %v2122 = vrot.slane %v1078, 4
        %v2123 = vsel %vm2085, %v2117, %v2122
        %v2124 = vrot.slane %v1079, 4
        %v2125 = vsel %vm2085, %v2120, %v2124
        %v2150 = vadd.f32 %v1056, %v2088
        %v2151 = vadd.f32 %v1057, %v2091
        %v2152 = vadd.f32 %v1058, %v2093
        %v2153 = vadd.f32 %v1059, %v2095
        %v2154 = vadd.f32 %v1060, %v2092
        %v2155 = vadd.f32 %v1061, %v2094
        %v2156 = vadd.f32 %v1062, %v2098
        %v2157 = vadd.f32 %v1063, %v2101
        %v2158 = vadd.f32 %v1064, %v2103
        %v2159 = vadd.f32 %v1065, %v2105
        %v2160 = vadd.f32 %v1066, %v2102
        %v2161 = vadd.f32 %v1067, %v2104
        %v2162 = vadd.f32 %v1068, %v2108
        %v2163 = vadd.f32 %v1069, %v2111
        %v2164 = vadd.f32 %v1070, %v2113
        %v2165 = vadd.f32 %v1071, %v2115
        %v2166 = vadd.f32 %v1072, %v2112
        %v2167 = vadd.f32 %v1073, %v2114
        %v2168 = vadd.f32 %v1074, %v2118
        %v2169 = vadd.f32 %v1075, %v2121
        %v2170 = vadd.f32 %v1076, %v2123
        %v2171 = vadd.f32 %v1077, %v2125
        %v2172 = vadd.f32 %v1078, %v2122
        %v2173 = vadd.f32 %v1079, %v2124
        %v2174 = vmul.f32 %v2150, 0.006646033
        %v2175 = vmul.f32 %v2151, 0.006646033
        %v2176 = vmul.f32 %v2152, 0.006646033
        %v2177 = vmul.f32 %v2153, 0.006646033
        %v2178 = vmul.f32 %v2154, 0.006646033
        %v2179 = vmul.f32 %v2155, 0.006646033
        %v2180 = vmul.f32 %v2156, 0.006646033
        %v2181 = vmul.f32 %v2157, 0.006646033
        %v2182 = vmul.f32 %v2158, 0.006646033
        %v2183 = vmul.f32 %v2159, 0.006646033
        %v2184 = vmul.f32 %v2160, 0.006646033
        %v2185 = vmul.f32 %v2161, 0.006646033
        %v2186 = vmul.f32 %v2162, 0.006646033
        %v2187 = vmul.f32 %v2163, 0.006646033
        %v2188 = vmul.f32 %v2164, 0.006646033
        %v2189 = vmul.f32 %v2165, 0.006646033
        %v2190 = vmul.f32 %v2166, 0.006646033
        %v2191 = vmul.f32 %v2167, 0.006646033
        %v2192 = vmul.f32 %v2168, 0.006646033
        %v2193 = vmul.f32 %v2169, 0.006646033
        %v2194 = vmul.f32 %v2170, 0.006646033
        %v2195 = vmul.f32 %v2171, 0.006646033
        %v2196 = vmul.f32 %v2172, 0.006646033
        %v2197 = vmul.f32 %v2173, 0.006646033
        %vm2222 = vcmask 1041408
        %v2223 = vrot.slane %v2174, 6
        %v2224 = vrot.slane %v2175, 6
        %v2225 = vrot.slane %v2176, 6
        %v2226 = vsel %vm2222, %v2223, %v2225
        %v2227 = vrot.slane %v2177, 6
        %v2228 = vsel %vm2222, %v2224, %v2227
        %v2229 = vrot.slane %v2178, 6
        %v2230 = vsel %vm2222, %v2225, %v2229
        %v2231 = vrot.slane %v2179, 6
        %v2232 = vsel %vm2222, %v2227, %v2231
        %v2233 = vrot.slane %v2180, 6
        %v2234 = vrot.slane %v2181, 6
        %v2235 = vrot.slane %v2182, 6
        %v2236 = vsel %vm2222, %v2233, %v2235
        %v2237 = vrot.slane %v2183, 6
        %v2238 = vsel %vm2222, %v2234, %v2237
        %v2239 = vrot.slane %v2184, 6
        %v2240 = vsel %vm2222, %v2235, %v2239
        %v2241 = vrot.slane %v2185, 6
        %v2242 = vsel %vm2222, %v2237, %v2241
        %v2243 = vrot.slane %v2186, 6
        %v2244 = vrot.slane %v2187, 6
        %v2245 = vrot.slane %v2188, 6
        %v2246 = vsel %vm2222, %v2243, %v2245
        %v2247 = vrot.slane %v2189, 6
        %v2248 = vsel %vm2222, %v2244, %v2247
        %v2249 = vrot.slane %v2190, 6
        %v2250 = vsel %vm2222, %v2245, %v2249
        %v2251 = vrot.slane %v2191, 6
        %v2252 = vsel %vm2222, %v2247, %v2251
        %v2253 = vrot.slane %v2192, 6
        %v2254 = vrot.slane %v2193, 6
        %v2255 = vrot.slane %v2194, 6
        %v2256 = vsel %vm2222, %v2253, %v2255
        %v2257 = vrot.slane %v2195, 6
        %v2258 = vsel %vm2222, %v2254, %v2257
        %v2259 = vrot.slane %v2196, 6
        %v2260 = vsel %vm2222, %v2255, %v2259
        %v2261 = vrot.slane %v2197, 6
        %v2262 = vsel %vm2222, %v2257, %v2261
        %v2287 = vadd.f32 %v2061, %v2223
        %v2288 = vadd.f32 %v2062, %v2224
        %v2289 = vadd.f32 %v2063, %v2226
        %v2290 = vadd.f32 %v2064, %v2228
        %v2291 = vadd.f32 %v2065, %v2230
        %v2292 = vadd.f32 %v2066, %v2232
        %v2293 = vadd.f32 %v2067, %v2233
        %v2294 = vadd.f32 %v2068, %v2234
        %v2295 = vadd.f32 %v2069, %v2236
        %v2296 = vadd.f32 %v2070, %v2238
        %v2297 = vadd.f32 %v2071, %v2240
        %v2298 = vadd.f32 %v2072, %v2242
        %v2299 = vadd.f32 %v2073, %v2243
        %v2300 = vadd.f32 %v2074, %v2244
        %v2301 = vadd.f32 %v2075, %v2246
        %v2302 = vadd.f32 %v2076, %v2248
        %v2303 = vadd.f32 %v2077, %v2250
        %v2304 = vadd.f32 %v2078, %v2252
        %v2305 = vadd.f32 %v2079, %v2253
        %v2306 = vadd.f32 %v2080, %v2254
        %v2307 = vadd.f32 %v2081, %v2256
        %v2308 = vadd.f32 %v2082, %v2258
        %v2309 = vadd.f32 %v2083, %v2260
        %v2310 = vadd.f32 %v2084, %v2262
        %v2311 = vrot.slane %v1491, 4
        %v2312 = vrot.slane %v1493, 4
        %v2313 = vsel %vm2085, %v2311, %v2312
        %v2314 = vrot.slane %v1492, 4
        %v2315 = vrot.slane %v1494, 4
        %v2316 = vsel %vm2085, %v2314, %v2315
        %v2317 = vrot.slane %v1495, 4
        %v2318 = vsel %vm2085, %v2312, %v2317
        %v2319 = vrot.slane %v1496, 4
        %v2320 = vsel %vm2085, %v2315, %v2319
        %v2321 = vrot.slane %v1497, 4
        %v2322 = vrot.slane %v1499, 4
        %v2323 = vsel %vm2085, %v2321, %v2322
        %v2324 = vrot.slane %v1498, 4
        %v2325 = vrot.slane %v1500, 4
        %v2326 = vsel %vm2085, %v2324, %v2325
        %v2327 = vrot.slane %v1501, 4
        %v2328 = vsel %vm2085, %v2322, %v2327
        %v2329 = vrot.slane %v1502, 4
        %v2330 = vsel %vm2085, %v2325, %v2329
        %v2331 = vrot.slane %v1503, 4
        %v2332 = vrot.slane %v1505, 4
        %v2333 = vsel %vm2085, %v2331, %v2332
        %v2334 = vrot.slane %v1504, 4
        %v2335 = vrot.slane %v1506, 4
        %v2336 = vsel %vm2085, %v2334, %v2335
        %v2337 = vrot.slane %v1507, 4
        %v2338 = vsel %vm2085, %v2332, %v2337
        %v2339 = vrot.slane %v1508, 4
        %v2340 = vsel %vm2085, %v2335, %v2339
        %v2341 = vrot.slane %v1509, 4
        %v2342 = vrot.slane %v1511, 4
        %v2343 = vsel %vm2085, %v2341, %v2342
        %v2344 = vrot.slane %v1510, 4
        %v2345 = vrot.slane %v1512, 4
        %v2346 = vsel %vm2085, %v2344, %v2345
        %v2347 = vrot.slane %v1513, 4
        %v2348 = vsel %vm2085, %v2342, %v2347
        %v2349 = vrot.slane %v1514, 4
        %v2350 = vsel %vm2085, %v2345, %v2349
        %v2375 = vadd.f32 %v1491, %v2313
        %v2376 = vadd.f32 %v1492, %v2316
        %v2377 = vadd.f32 %v1493, %v2318
        %v2378 = vadd.f32 %v1494, %v2320
        %v2379 = vadd.f32 %v1495, %v2317
        %v2380 = vadd.f32 %v1496, %v2319
        %v2381 = vadd.f32 %v1497, %v2323
        %v2382 = vadd.f32 %v1498, %v2326
        %v2383 = vadd.f32 %v1499, %v2328
        %v2384 = vadd.f32 %v1500, %v2330
        %v2385 = vadd.f32 %v1501, %v2327
        %v2386 = vadd.f32 %v1502, %v2329
        %v2387 = vadd.f32 %v1503, %v2333
        %v2388 = vadd.f32 %v1504, %v2336
        %v2389 = vadd.f32 %v1505, %v2338
        %v2390 = vadd.f32 %v1506, %v2340
        %v2391 = vadd.f32 %v1507, %v2337
        %v2392 = vadd.f32 %v1508, %v2339
        %v2393 = vadd.f32 %v1509, %v2343
        %v2394 = vadd.f32 %v1510, %v2346
        %v2395 = vadd.f32 %v1511, %v2348
        %v2396 = vadd.f32 %v1512, %v2350
        %v2397 = vadd.f32 %v1513, %v2347
        %v2398 = vadd.f32 %v1514, %v2349
        %v2399 = vmul.f32 %v2375, 0.09719199
        %v2400 = vmul.f32 %v2376, 0.09719199
        %v2401 = vmul.f32 %v2377, 0.09719199
        %v2402 = vmul.f32 %v2378, 0.09719199
        %v2403 = vmul.f32 %v2379, 0.09719199
        %v2404 = vmul.f32 %v2380, 0.09719199
        %v2405 = vmul.f32 %v2381, 0.09719199
        %v2406 = vmul.f32 %v2382, 0.09719199
        %v2407 = vmul.f32 %v2383, 0.09719199
        %v2408 = vmul.f32 %v2384, 0.09719199
        %v2409 = vmul.f32 %v2385, 0.09719199
        %v2410 = vmul.f32 %v2386, 0.09719199
        %v2411 = vmul.f32 %v2387, 0.09719199
        %v2412 = vmul.f32 %v2388, 0.09719199
        %v2413 = vmul.f32 %v2389, 0.09719199
        %v2414 = vmul.f32 %v2390, 0.09719199
        %v2415 = vmul.f32 %v2391, 0.09719199
        %v2416 = vmul.f32 %v2392, 0.09719199
        %v2417 = vmul.f32 %v2393, 0.09719199
        %v2418 = vmul.f32 %v2394, 0.09719199
        %v2419 = vmul.f32 %v2395, 0.09719199
        %v2420 = vmul.f32 %v2396, 0.09719199
        %v2421 = vmul.f32 %v2397, 0.09719199
        %v2422 = vmul.f32 %v2398, 0.09719199
        %v2447 = vrot.slane %v2399, 6
        %v2448 = vrot.slane %v2400, 6
        %v2449 = vrot.slane %v2401, 6
        %v2450 = vsel %vm2222, %v2447, %v2449
        %v2451 = vrot.slane %v2402, 6
        %v2452 = vsel %vm2222, %v2448, %v2451
        %v2453 = vrot.slane %v2403, 6
        %v2454 = vsel %vm2222, %v2449, %v2453
        %v2455 = vrot.slane %v2404, 6
        %v2456 = vsel %vm2222, %v2451, %v2455
        %v2457 = vrot.slane %v2405, 6
        %v2458 = vrot.slane %v2406, 6
        %v2459 = vrot.slane %v2407, 6
        %v2460 = vsel %vm2222, %v2457, %v2459
        %v2461 = vrot.slane %v2408, 6
        %v2462 = vsel %vm2222, %v2458, %v2461
        %v2463 = vrot.slane %v2409, 6
        %v2464 = vsel %vm2222, %v2459, %v2463
        %v2465 = vrot.slane %v2410, 6
        %v2466 = vsel %vm2222, %v2461, %v2465
        %v2467 = vrot.slane %v2411, 6
        %v2468 = vrot.slane %v2412, 6
        %v2469 = vrot.slane %v2413, 6
        %v2470 = vsel %vm2222, %v2467, %v2469
        %v2471 = vrot.slane %v2414, 6
        %v2472 = vsel %vm2222, %v2468, %v2471
        %v2473 = vrot.slane %v2415, 6
        %v2474 = vsel %vm2222, %v2469, %v2473
        %v2475 = vrot.slane %v2416, 6
        %v2476 = vsel %vm2222, %v2471, %v2475
        %v2477 = vrot.slane %v2417, 6
        %v2478 = vrot.slane %v2418, 6
        %v2479 = vrot.slane %v2419, 6
        %v2480 = vsel %vm2222, %v2477, %v2479
        %v2481 = vrot.slane %v2420, 6
        %v2482 = vsel %vm2222, %v2478, %v2481
        %v2483 = vrot.slane %v2421, 6
        %v2484 = vsel %vm2222, %v2479, %v2483
        %v2485 = vrot.slane %v2422, 6
        %v2486 = vsel %vm2222, %v2481, %v2485
        %v2511 = vsub.f32 %v2287, %v2447
        %v2512 = vsub.f32 %v2288, %v2448
        %v2513 = vsub.f32 %v2289, %v2450
        %v2514 = vsub.f32 %v2290, %v2452
        %v2515 = vsub.f32 %v2291, %v2454
        %v2516 = vsub.f32 %v2292, %v2456
        %v2517 = vsub.f32 %v2293, %v2457
        %v2518 = vsub.f32 %v2294, %v2458
        %v2519 = vsub.f32 %v2295, %v2460
        %v2520 = vsub.f32 %v2296, %v2462
        %v2521 = vsub.f32 %v2297, %v2464
        %v2522 = vsub.f32 %v2298, %v2466
        %v2523 = vsub.f32 %v2299, %v2467
        %v2524 = vsub.f32 %v2300, %v2468
        %v2525 = vsub.f32 %v2301, %v2470
        %v2526 = vsub.f32 %v2302, %v2472
        %v2527 = vsub.f32 %v2303, %v2474
        %v2528 = vsub.f32 %v2304, %v2476
        %v2529 = vsub.f32 %v2305, %v2477
        %v2530 = vsub.f32 %v2306, %v2478
        %v2531 = vsub.f32 %v2307, %v2480
        %v2532 = vsub.f32 %v2308, %v2482
        %v2533 = vsub.f32 %v2309, %v2484
        %v2534 = vsub.f32 %v2310, %v2486
        %v2535 = vrot.slane %v1491, 6
        %v2536 = vrot.slane %v1493, 6
        %v2537 = vsel %vm2222, %v2535, %v2536
        %v2538 = vrot.slane %v1492, 6
        %v2539 = vrot.slane %v1494, 6
        %v2540 = vsel %vm2222, %v2538, %v2539
        %v2541 = vrot.slane %v1495, 6
        %v2542 = vsel %vm2222, %v2536, %v2541
        %v2543 = vrot.slane %v1496, 6
        %v2544 = vsel %vm2222, %v2539, %v2543
        %v2545 = vrot.slane %v1497, 6
        %v2546 = vrot.slane %v1499, 6
        %v2547 = vsel %vm2222, %v2545, %v2546
        %v2548 = vrot.slane %v1498, 6
        %v2549 = vrot.slane %v1500, 6
        %v2550 = vsel %vm2222, %v2548, %v2549
        %v2551 = vrot.slane %v1501, 6
        %v2552 = vsel %vm2222, %v2546, %v2551
        %v2553 = vrot.slane %v1502, 6
        %v2554 = vsel %vm2222, %v2549, %v2553
        %v2555 = vrot.slane %v1503, 6
        %v2556 = vrot.slane %v1505, 6
        %v2557 = vsel %vm2222, %v2555, %v2556
        %v2558 = vrot.slane %v1504, 6
        %v2559 = vrot.slane %v1506, 6
        %v2560 = vsel %vm2222, %v2558, %v2559
        %v2561 = vrot.slane %v1507, 6
        %v2562 = vsel %vm2222, %v2556, %v2561
        %v2563 = vrot.slane %v1508, 6
        %v2564 = vsel %vm2222, %v2559, %v2563
        %v2565 = vrot.slane %v1509, 6
        %v2566 = vrot.slane %v1511, 6
        %v2567 = vsel %vm2222, %v2565, %v2566
        %v2568 = vrot.slane %v1510, 6
        %v2569 = vrot.slane %v1512, 6
        %v2570 = vsel %vm2222, %v2568, %v2569
        %v2571 = vrot.slane %v1513, 6
        %v2572 = vsel %vm2222, %v2566, %v2571
        %v2573 = vrot.slane %v1514, 6
        %v2574 = vsel %vm2222, %v2569, %v2573
        %v2599 = vadd.f32 %v1491, %v2537
        %v2600 = vadd.f32 %v1492, %v2540
        %v2601 = vadd.f32 %v1493, %v2542
        %v2602 = vadd.f32 %v1494, %v2544
        %v2603 = vadd.f32 %v1495, %v2541
        %v2604 = vadd.f32 %v1496, %v2543
        %v2605 = vadd.f32 %v1497, %v2547
        %v2606 = vadd.f32 %v1498, %v2550
        %v2607 = vadd.f32 %v1499, %v2552
        %v2608 = vadd.f32 %v1500, %v2554
        %v2609 = vadd.f32 %v1501, %v2551
        %v2610 = vadd.f32 %v1502, %v2553
        %v2611 = vadd.f32 %v1503, %v2557
        %v2612 = vadd.f32 %v1504, %v2560
        %v2613 = vadd.f32 %v1505, %v2562
        %v2614 = vadd.f32 %v1506, %v2564
        %v2615 = vadd.f32 %v1507, %v2561
        %v2616 = vadd.f32 %v1508, %v2563
        %v2617 = vadd.f32 %v1509, %v2567
        %v2618 = vadd.f32 %v1510, %v2570
        %v2619 = vadd.f32 %v1511, %v2572
        %v2620 = vadd.f32 %v1512, %v2574
        %v2621 = vadd.f32 %v1513, %v2571
        %v2622 = vadd.f32 %v1514, %v2573
        %v2623 = vmul.f32 %v2599, 0.023817923
        %v2624 = vmul.f32 %v2600, 0.023817923
        %v2625 = vmul.f32 %v2601, 0.023817923
        %v2626 = vmul.f32 %v2602, 0.023817923
        %v2627 = vmul.f32 %v2603, 0.023817923
        %v2628 = vmul.f32 %v2604, 0.023817923
        %v2629 = vmul.f32 %v2605, 0.023817923
        %v2630 = vmul.f32 %v2606, 0.023817923
        %v2631 = vmul.f32 %v2607, 0.023817923
        %v2632 = vmul.f32 %v2608, 0.023817923
        %v2633 = vmul.f32 %v2609, 0.023817923
        %v2634 = vmul.f32 %v2610, 0.023817923
        %v2635 = vmul.f32 %v2611, 0.023817923
        %v2636 = vmul.f32 %v2612, 0.023817923
        %v2637 = vmul.f32 %v2613, 0.023817923
        %v2638 = vmul.f32 %v2614, 0.023817923
        %v2639 = vmul.f32 %v2615, 0.023817923
        %v2640 = vmul.f32 %v2616, 0.023817923
        %v2641 = vmul.f32 %v2617, 0.023817923
        %v2642 = vmul.f32 %v2618, 0.023817923
        %v2643 = vmul.f32 %v2619, 0.023817923
        %v2644 = vmul.f32 %v2620, 0.023817923
        %v2645 = vmul.f32 %v2621, 0.023817923
        %v2646 = vmul.f32 %v2622, 0.023817923
        %vm2671 = vcmask 1042432
        %v2672 = vrot.slane %v2623, 5
        %v2673 = vrot.slane %v2624, 5
        %v2674 = vrot.slane %v2625, 5
        %v2675 = vsel %vm2671, %v2672, %v2674
        %v2676 = vrot.slane %v2626, 5
        %v2677 = vsel %vm2671, %v2673, %v2676
        %v2678 = vrot.slane %v2627, 5
        %v2679 = vsel %vm2671, %v2674, %v2678
        %v2680 = vrot.slane %v2628, 5
        %v2681 = vsel %vm2671, %v2676, %v2680
        %v2682 = vrot.slane %v2629, 5
        %v2683 = vrot.slane %v2630, 5
        %v2684 = vrot.slane %v2631, 5
        %v2685 = vsel %vm2671, %v2682, %v2684
        %v2686 = vrot.slane %v2632, 5
        %v2687 = vsel %vm2671, %v2683, %v2686
        %v2688 = vrot.slane %v2633, 5
        %v2689 = vsel %vm2671, %v2684, %v2688
        %v2690 = vrot.slane %v2634, 5
        %v2691 = vsel %vm2671, %v2686, %v2690
        %v2692 = vrot.slane %v2635, 5
        %v2693 = vrot.slane %v2636, 5
        %v2694 = vrot.slane %v2637, 5
        %v2695 = vsel %vm2671, %v2692, %v2694
        %v2696 = vrot.slane %v2638, 5
        %v2697 = vsel %vm2671, %v2693, %v2696
        %v2698 = vrot.slane %v2639, 5
        %v2699 = vsel %vm2671, %v2694, %v2698
        %v2700 = vrot.slane %v2640, 5
        %v2701 = vsel %vm2671, %v2696, %v2700
        %v2702 = vrot.slane %v2641, 5
        %v2703 = vrot.slane %v2642, 5
        %v2704 = vrot.slane %v2643, 5
        %v2705 = vsel %vm2671, %v2702, %v2704
        %v2706 = vrot.slane %v2644, 5
        %v2707 = vsel %vm2671, %v2703, %v2706
        %v2708 = vrot.slane %v2645, 5
        %v2709 = vsel %vm2671, %v2704, %v2708
        %v2710 = vrot.slane %v2646, 5
        %v2711 = vsel %vm2671, %v2706, %v2710
        %v2736 = vsub.f32 %v2511, %v2672
        %v2737 = vsub.f32 %v2512, %v2673
        %v2738 = vsub.f32 %v2513, %v2675
        %v2739 = vsub.f32 %v2514, %v2677
        %v2740 = vsub.f32 %v2515, %v2679
        %v2741 = vsub.f32 %v2516, %v2681
        %v2742 = vsub.f32 %v2517, %v2682
        %v2743 = vsub.f32 %v2518, %v2683
        %v2744 = vsub.f32 %v2519, %v2685
        %v2745 = vsub.f32 %v2520, %v2687
        %v2746 = vsub.f32 %v2521, %v2689
        %v2747 = vsub.f32 %v2522, %v2691
        %v2748 = vsub.f32 %v2523, %v2692
        %v2749 = vsub.f32 %v2524, %v2693
        %v2750 = vsub.f32 %v2525, %v2695
        %v2751 = vsub.f32 %v2526, %v2697
        %v2752 = vsub.f32 %v2527, %v2699
        %v2753 = vsub.f32 %v2528, %v2701
        %v2754 = vsub.f32 %v2529, %v2702
        %v2755 = vsub.f32 %v2530, %v2703
        %v2756 = vsub.f32 %v2531, %v2705
        %v2757 = vsub.f32 %v2532, %v2707
        %v2758 = vsub.f32 %v2533, %v2709
        %v2759 = vsub.f32 %v2534, %v2711
        %v2760 = vadd.f32 %v1491, %v1493
        %v2761 = vadd.f32 %v1492, %v1494
        %v2762 = vadd.f32 %v1493, %v1495
        %v2763 = vadd.f32 %v1494, %v1496
        %v2764 = vadd.f32 %v1497, %v1499
        %v2765 = vadd.f32 %v1498, %v1500
        %v2766 = vadd.f32 %v1499, %v1501
        %v2767 = vadd.f32 %v1500, %v1502
        %v2768 = vadd.f32 %v1503, %v1505
        %v2769 = vadd.f32 %v1504, %v1506
        %v2770 = vadd.f32 %v1505, %v1507
        %v2771 = vadd.f32 %v1506, %v1508
        %v2772 = vadd.f32 %v1509, %v1511
        %v2773 = vadd.f32 %v1510, %v1512
        %v2774 = vadd.f32 %v1511, %v1513
        %v2775 = vadd.f32 %v1512, %v1514
        %v2776 = vmul.f32 %v2760, 0.003325727
        %v2777 = vmul.f32 %v2761, 0.003325727
        %v2778 = vmul.f32 %v2762, 0.003325727
        %v2779 = vmul.f32 %v2763, 0.003325727
        %v2780 = vmul.f32 %v2764, 0.003325727
        %v2781 = vmul.f32 %v2765, 0.003325727
        %v2782 = vmul.f32 %v2766, 0.003325727
        %v2783 = vmul.f32 %v2767, 0.003325727
        %v2784 = vmul.f32 %v2768, 0.003325727
        %v2785 = vmul.f32 %v2769, 0.003325727
        %v2786 = vmul.f32 %v2770, 0.003325727
        %v2787 = vmul.f32 %v2771, 0.003325727
        %v2788 = vmul.f32 %v2772, 0.003325727
        %v2789 = vmul.f32 %v2773, 0.003325727
        %v2790 = vmul.f32 %v2774, 0.003325727
        %v2791 = vmul.f32 %v2775, 0.003325727
        %v2808 = vrot.slane %v2776, 4
        %v2809 = vrot.slane %v2777, 4
        %v2810 = vrot.slane %v2778, 4
        %v2811 = vsel %vm2085, %v2808, %v2810
        %v2812 = vrot.slane %v2779, 4
        %v2813 = vsel %vm2085, %v2809, %v2812
        %v2814 = vrot.slane %v2780, 4
        %v2815 = vrot.slane %v2781, 4
        %v2816 = vrot.slane %v2782, 4
        %v2817 = vsel %vm2085, %v2814, %v2816
        %v2818 = vrot.slane %v2783, 4
        %v2819 = vsel %vm2085, %v2815, %v2818
        %v2820 = vrot.slane %v2784, 4
        %v2821 = vrot.slane %v2785, 4
        %v2822 = vrot.slane %v2786, 4
        %v2823 = vsel %vm2085, %v2820, %v2822
        %v2824 = vrot.slane %v2787, 4
        %v2825 = vsel %vm2085, %v2821, %v2824
        %v2826 = vrot.slane %v2788, 4
        %v2827 = vrot.slane %v2789, 4
        %v2828 = vrot.slane %v2790, 4
        %v2829 = vsel %vm2085, %v2826, %v2828
        %v2830 = vrot.slane %v2791, 4
        %v2831 = vsel %vm2085, %v2827, %v2830
        %v2856 = vsub.f32 %v2736, %v2808
        %v2857 = vsub.f32 %v2737, %v2809
        %v2858 = vsub.f32 %v2738, %v2811
        %v2859 = vsub.f32 %v2739, %v2813
        %v2860 = vsub.f32 %v2740, %v2810
        %v2861 = vsub.f32 %v2741, %v2812
        %v2862 = vsub.f32 %v2742, %v2814
        %v2863 = vsub.f32 %v2743, %v2815
        %v2864 = vsub.f32 %v2744, %v2817
        %v2865 = vsub.f32 %v2745, %v2819
        %v2866 = vsub.f32 %v2746, %v2816
        %v2867 = vsub.f32 %v2747, %v2818
        %v2868 = vsub.f32 %v2748, %v2820
        %v2869 = vsub.f32 %v2749, %v2821
        %v2870 = vsub.f32 %v2750, %v2823
        %v2871 = vsub.f32 %v2751, %v2825
        %v2872 = vsub.f32 %v2752, %v2822
        %v2873 = vsub.f32 %v2753, %v2824
        %v2874 = vsub.f32 %v2754, %v2826
        %v2875 = vsub.f32 %v2755, %v2827
        %v2876 = vsub.f32 %v2756, %v2829
        %v2877 = vsub.f32 %v2757, %v2831
        %v2878 = vsub.f32 %v2758, %v2828
        %v2879 = vsub.f32 %v2759, %v2830
        %2904 = vrot.lane.b32.xlu0 %v2856, 124
        %v2905 = vpop.permute.xlu0 %2904
        %2906 = vrot.lane.b32.xlu0 %v2857, 124
        %v2907 = vpop.permute.xlu0 %2906
        %2908 = vrot.lane.b32.xlu0 %v2858, 124
        %v2909 = vpop.permute.xlu0 %2908
        %2910 = vrot.lane.b32.xlu0 %v2859, 124
        %v2911 = vpop.permute.xlu0 %2910
        %2912 = vrot.lane.b32.xlu0 %v2860, 124
        %v2913 = vpop.permute.xlu0 %2912
        %2914 = vrot.lane.b32.xlu0 %v2861, 124
        %v2915 = vpop.permute.xlu0 %2914
        %2916 = vrot.lane.b32.xlu0 %v2862, 124
        %v2917 = vpop.permute.xlu0 %2916
        %2918 = vrot.lane.b32.xlu0 %v2863, 124
        %v2919 = vpop.permute.xlu0 %2918
        %2920 = vrot.lane.b32.xlu0 %v2864, 124
        %v2921 = vpop.permute.xlu0 %2920
        %2922 = vrot.lane.b32.xlu0 %v2865, 124
        %v2923 = vpop.permute.xlu0 %2922
        %2924 = vrot.lane.b32.xlu0 %v2866, 124
        %v2925 = vpop.permute.xlu0 %2924
        %2926 = vrot.lane.b32.xlu0 %v2867, 124
        %v2927 = vpop.permute.xlu0 %2926
        %2928 = vrot.lane.b32.xlu0 %v2868, 124
        %v2929 = vpop.permute.xlu0 %2928
        %2930 = vrot.lane.b32.xlu0 %v2869, 124
        %v2931 = vpop.permute.xlu0 %2930
        %2932 = vrot.lane.b32.xlu0 %v2870, 124
        %v2933 = vpop.permute.xlu0 %2932
        %2934 = vrot.lane.b32.xlu0 %v2871, 124
        %v2935 = vpop.permute.xlu0 %2934
        %2936 = vrot.lane.b32.xlu0 %v2872, 124
        %v2937 = vpop.permute.xlu0 %2936
        %2938 = vrot.lane.b32.xlu0 %v2873, 124
        %v2939 = vpop.permute.xlu0 %2938
        %2940 = vrot.lane.b32.xlu0 %v2874, 124
        %v2941 = vpop.permute.xlu0 %2940
        %2942 = vrot.lane.b32.xlu0 %v2875, 124
        %v2943 = vpop.permute.xlu0 %2942
        %2944 = vrot.lane.b32.xlu0 %v2876, 124
        %v2945 = vpop.permute.xlu0 %2944
        %2946 = vrot.lane.b32.xlu0 %v2877, 124
        %v2947 = vpop.permute.xlu0 %2946
        %2948 = vrot.lane.b32.xlu0 %v2878, 124
        %v2949 = vpop.permute.xlu0 %2948
        %2950 = vrot.lane.b32.xlu0 %v2879, 124
        %v2951 = vpop.permute.xlu0 %2950
        %v2952 = vsel %vm706, %v2905, %v2907
        %v2953 = vsel %vm706, %v2909, %v2911
        %v2954 = vsel %vm706, %v2913, %v2915
        %v2955 = vsel %vm706, %v2917, %v2919
        %v2956 = vsel %vm706, %v2921, %v2923
        %v2957 = vsel %vm706, %v2925, %v2927
        %v2958 = vsel %vm706, %v2929, %v2931
        %v2959 = vsel %vm706, %v2933, %v2935
        %v2960 = vsel %vm706, %v2937, %v2939
        %v2961 = vsel %vm706, %v2941, %v2943
        %v2962 = vsel %vm706, %v2945, %v2947
        %v2963 = vsel %vm706, %v2949, %v2951
        %2976 = vst [vmem:[%s137 - $0x4] sm:$0xf0] %v2952
        %2977 = vst [vmem:[%s137 + $0x4] sm:$0xff] %v2953
        %2978 = vst [vmem:[%s137 + $0xc] sm:$0xf] %v2954
        %2979 = vst [vmem:[%s137 + $0xc] sm:$0xf0] %v2955
        %2980 = vst [vmem:[%s137 + $0x14] sm:$0xff] %v2956
        %2981 = vst [vmem:[%s137 + $0x1c] sm:$0xf] %v2957
        %2982 = vst [vmem:[%s137 + $0x1c] sm:$0xf0] %v2958
        %2983 = vst [vmem:[%s137 + $0x24] sm:$0xff] %v2959
        %2984 = vst [vmem:[%s137 + $0x2c] sm:$0xf] %v2960
        %2985 = vst [vmem:[%s137 + $0x2c] sm:$0xf0] %v2961
        %2986 = vst [vmem:[%s137 + $0x34] sm:$0xff] %v2962
        %2987 = vst [vmem:[%s137 + $0x3c] sm:$0xf] %v2963
        %s2988 = sand.u32 %s52, 1
        %s2989 = scalar_lea.sflag [#allocation4], %s2988
        %s2990 = sand.u32 %s52, 1
        %s2991 = smul.addr %s2990, 64
        %s2992 = scalar_lea.vmem [#allocation5], %s2991
        // Predicated region
        $region29: #{tpu_custom_call.1} parent=23 // pred_check
          %p2993 = pneg %p62
        $region30: #{tpu_custom_call.1} parent=23 // pred_check_branch
          %2995 = sbr.rel (%p2993) target = $region32
        $region31: #{tpu_custom_call.1} parent=23 // pred_region
          %s2996 = smul.u32 4, %s18
          %2998 = vsyncadd %s2989, 0
          %s2999 = smul.addr %s2996, 2
          %s3000 = smul.addr %s2999, 8
          %s3001 = scalar_lea.hbm %s1, %s3000
          %s3002 = sshll.u32 %s2992, 4
          %s3003 = int_to_ptr.vmem [resolvable:$true] %s3002
          %s3004 = sshll.u32 %s3001, 4
          %s3005 = int_to_ptr.hbm [resolvable:$true] %s3004
          %3010 = dma.vmem_to_hbm [thread:$0]  %s3003, 1024, %s3005, %s2989, 128, 128, 8
        $region32: #{tpu_custom_call.1} parent=23 // pred_fallthru
          _
      $region24: #{tpu_custom_call.1} parent=5 // pred_fallthru
        _
      %p3011 = scmp.le.s32.totalorder 2, %s13
      // Predicated region
      $region33: #{tpu_custom_call.1} parent=5 // pred_check
        %p3012 = pneg %p3011
      $region34: #{tpu_custom_call.1} parent=5 // pred_check_branch
        %3014 = sbr.rel (%p3012) target = $region36
      $region35: #{tpu_custom_call.1} parent=5 // pred_region
        %s3015 = ssub.s32 %s13, 2
        // Predicated region
        $region37: #{tpu_custom_call.1} parent=35 // pred_check
          %p3016 = pneg %p68
        $region38: #{tpu_custom_call.1} parent=35 // pred_check_branch
          %3018 = sbr.rel (%p3016) target = $region40
        $region39: #{tpu_custom_call.1} parent=35 // pred_region
          %s3019 = sand.u32 %s53, 1
          %s3020 = scalar_lea.sflag [#allocation4], %s3019
          %s3021 = sand.u32 %s53, 1
          %s3022 = smul.addr %s3021, 64
          %s3023 = scalar_lea.vmem [#allocation5], %s3022
          %3025 = dma.done %s3020, 1024
        $region40: #{tpu_custom_call.1} parent=35 // pred_fallthru
          _
      $region36: #{tpu_custom_call.1} parent=5 // pred_fallthru
        _
    $region6: #{tpu_custom_call.1} parent=1 // loop_footer
      %s17 = sadd.s32 1, %s13
    $region7: #{tpu_custom_call.1} parent=1 // loop_footer_branch
      %12 = sbr.rel target = $region3
    $region8: #{tpu_custom_call.1} parent=1 // loop_exit
      _
    %3026 = vsyncpa [#allocation3], 1
    %s3027 = scalar_lea.sflag [#allocation3], 1
    %3028 = vsyncpa %s3027, 1
    %3029 = vsyncpa [#allocation4], 1
    %s3030 = scalar_lea.sflag [#allocation4], 1
    %3031 = vsyncpa %s3030, 1

</llo_original>
